<compile_context>
chip_gen: v7x
topology: tpu7x:2x2x1
jax: 0.10.0
libtpu: 0.0.40
codegen_flags: <defaults>
</compile_context>

<pallas_src>
import functools

import jax
import jax.numpy as jnp
from jax import lax
from jax.experimental import pallas as pl
from jax.experimental.pallas import tpu as pltpu


def _swish(y, fast):
    # Swish / SiLU: y * sigmoid(y).  Elementwise math stays f32 on all generations.
    if fast:
        # exp and reciprocal both ride the EUP slot; avoids a full VPU divide.
        return y * pl.reciprocal(1.0 + jnp.exp(-y), approx=True)
    return y * jax.nn.sigmoid(y)


def _fused_mlp_kernel(x_ref, *refs, n_layers, fast):
    """Whole-network fused forward on one batch tile.

    x_ref : (TN, K0) block of x in its natural (batch, feature) layout.
    refs  : (w1, b1, ..., wL, bL, out_ref); w_i is (O_i, K_i) (PyTorch layout),
            b_i is (O_i, 1); out_ref is (O_L, TN).
    All intermediates are kept in the transposed orientation h (O, TN) so the
    batch sits on the 128-wide lane axis.
    """
    out_ref = refs[-1]
    wb = refs[:-1]

    xb = x_ref[...].astype(jnp.float32)                      # (TN, K0)
    w0 = wb[0][...].astype(jnp.float32)                      # (O1, K0)
    b0 = wb[1][...].astype(jnp.float32)                      # (O1, 1)

    # Layer 0: fuse the (TN,K0)->(K0,TN) transpose into an NT matmul:
    #   h[o, n] = sum_k w0[o, k] * x[n, k]
    # Kept in f32 (input-coordinate precision matters for PINNs; K0 is tiny).
    h = lax.dot_general(w0, xb, (((1,), (1,)), ((), ())),
                        preferred_element_type=jnp.float32) + b0   # (O1, TN)
    if n_layers > 1:
        h = _swish(h, fast)

    for li in range(1, n_layers):
        w = wb[2 * li][...]                                  # (O, K)
        b = wb[2 * li + 1][...].astype(jnp.float32)          # (O, 1)
        if fast:
            y = jnp.dot(w.astype(jnp.bfloat16), h.astype(jnp.bfloat16),
                        preferred_element_type=jnp.float32)  # (O, TN), f32 acc
        else:
            y = jnp.dot(w.astype(jnp.float32), h,
                        preferred_element_type=jnp.float32)
        y = y + b                                            # broadcast over lanes
        if li < n_layers - 1:
            y = _swish(y, fast)
        h = y

    out_ref[...] = h.astype(out_ref.dtype)


def _round_up(x, m):
    return ((x + m - 1) // m) * m


def _choose_tile(n, tn_req):
    """Batch-tile (lane) size: multiple of 128, no larger than the padded batch,
    clamped to 2048 (v5e default scoped-VMEM headroom).  If the grid-step count
    is odd (>1), try a slightly smaller tile that makes it even so both v7x
    TensorCores get balanced, pipelined work."""
    tn = max(128, min(_round_up(tn_req, 128), _round_up(n, 128), 2048))
    steps = pl.cdiv(n, tn)
    if steps > 1 and steps % 2 == 1:
        tn_alt = _round_up(pl.cdiv(n, steps + 1), 128)
        if 256 <= tn_alt < tn and pl.cdiv(n, tn_alt) % 2 == 0:
            tn = tn_alt
    return tn


def pinn_t_forward(x, params, *, tn=512, fast=True):
    """PINN_T.forward as a single fused Pallas kernel.

    x:      (N, K0) float32 in the natural PyTorch layout (no wrapper transpose/pad).
    params: list of (w, b) with w in PyTorch (out, in) layout, b (out,) or (out, 1).
    fast:   bf16 MXU operands (f32 accumulate) + approx-EUP swish.
            fast=False keeps f32 matmuls and exact sigmoid (module-exact).
    returns (N, O_last) float32.
    """
    n_layers = len(params)
    N, K0 = x.shape
    assert params[0][0].shape[1] == K0
    o_last = params[-1][0].shape[0]

    tn = _choose_tile(N, tn)
    n_tiles = pl.cdiv(N, tn)   # partial edge block handled by Pallas masked writeback

    flat_inputs = [x]
    in_specs = [pl.BlockSpec((tn, K0), lambda i: (i, 0))]
    for w, b in params:
        b2d = b if b.ndim == 2 else b.reshape(-1, 1)
        flat_inputs.append(w)
        in_specs.append(pl.BlockSpec(w.shape, lambda i: (0, 0)))   # VMEM-resident
        flat_inputs.append(b2d)
        in_specs.append(pl.BlockSpec(b2d.shape, lambda i: (0, 0)))

    kernel = functools.partial(_fused_mlp_kernel, n_layers=n_layers, fast=fast)
    out_t = pl.pallas_call(
        kernel,
        out_shape=jax.ShapeDtypeStruct((o_last, N), x.dtype),
        grid=(n_tiles,),
        in_specs=in_specs,
        out_specs=pl.BlockSpec((o_last, tn), lambda i: (0, i)),
        compiler_params=pltpu.CompilerParams(
            dimension_semantics=("parallel",),
        ),
    )(*flat_inputs)

    # (o_last, N) -> (N, o_last); for o_last == 1 this is a trivial reshape.
    return out_t.T


def xavier_uniform(key, out_features, in_features, dtype=jnp.float32):
    # Matches torch.nn.init.xavier_uniform_ for a (out, in) Linear weight.
    limit = jnp.sqrt(6.0 / (in_features + out_features)).astype(dtype)
    return jax.random.uniform(
        key, (out_features, in_features), dtype=dtype, minval=-limit, maxval=limit
    )


def init_pinn_params(key, layer_sizes):
    """Xavier-uniform weights, zero biases (like PINN_T.__init__): W (out, in), b (out, 1)."""
    params = []
    for i in range(len(layer_sizes) - 1):
        key, sub = jax.random.split(key)
        w = xavier_uniform(sub, layer_sizes[i + 1], layer_sizes[i])
        b2d = jnp.zeros((layer_sizes[i + 1], 1), dtype=jnp.float32)
        params.append((w, b2d))
    return params


def _reference_forward(x, params):
    # Pure-JAX reference with the exact PyTorch semantics.
    h = x
    for i, (w, b2d) in enumerate(params):
        h = h @ w.T + b2d[:, 0]
        if i < len(params) - 1:
            h = h * jax.nn.sigmoid(h)
    return h


if __name__ == "__main__":
    # Small PINN: input dim 2 (e.g. (x, t)), a few hidden layers, scalar output.
    layer_sizes = [2, 32, 32, 32, 1]

    key = jax.random.PRNGKey(0)
    key_x, key_x2, key_p = jax.random.split(key, 3)
    params = init_pinn_params(key_p, layer_sizes)

    # Batch 1024 -> two parallel 512-lane tiles (even count keeps both v7x TCs busy).
    batch = 1024
    x = jax.random.normal(key_x, (batch, layer_sizes[0]), dtype=jnp.float32)
    ref = _reference_forward(x, params)

    out_precise = jax.block_until_ready(pinn_t_forward(x, params, fast=False))
    assert out_precise.shape == (batch, layer_sizes[-1])
    assert jnp.allclose(out_precise, ref, atol=2e-5, rtol=2e-5)

    out_fast = jax.block_until_ready(pinn_t_forward(x, params, fast=True))
    assert out_fast.shape == (batch, layer_sizes[-1])
    assert jnp.allclose(out_fast, ref, atol=5e-2, rtol=5e-2)

    # Non-128-multiple batch exercises the masked (un-padded) edge block.
    batch2 = 300
    x2 = jax.random.normal(key_x2, (batch2, layer_sizes[0]), dtype=jnp.float32)
    out2 = jax.block_until_ready(pinn_t_forward(x2, params, fast=False))
    ref2 = _reference_forward(x2, params)
    assert out2.shape == (batch2, layer_sizes[-1])
    assert jnp.allclose(out2, ref2, atol=2e-5, rtol=2e-5)

    # NOTE: for benchmarking, time the whole jit from an xprof trace (min of runs),
    # not just the Pallas call, so launch/layout overheads are attributed correctly.
    print("KERNEL_OK")
</pallas_src>

<mosaic_0001>
module attributes {stable_mosaic.version = 11 : i64} {
  func.func @_fused_mlp_kernel(%arg0: i32, %arg1: memref<512x2xf32, #tpu.memory_space<vmem>>, %arg2: memref<32x2xf32, #tpu.memory_space<vmem>>, %arg3: memref<32x1xf32, #tpu.memory_space<vmem>>, %arg4: memref<32x32xf32, #tpu.memory_space<vmem>>, %arg5: memref<32x1xf32, #tpu.memory_space<vmem>>, %arg6: memref<32x32xf32, #tpu.memory_space<vmem>>, %arg7: memref<32x1xf32, #tpu.memory_space<vmem>>, %arg8: memref<1x32xf32, #tpu.memory_space<vmem>>, %arg9: memref<1x1xf32, #tpu.memory_space<vmem>>, %arg10: memref<1x512xf32, #tpu.memory_space<vmem>>) attributes {dimension_semantics = [#tpu.dimension_semantics<parallel>], iteration_bounds = array<i64: 2>, scalar_prefetch = 0 : i64, scratch_operands = 0 : i64, tpu.core_type = #tpu.core_type<tc>, window_params = [{transform_indices = @transform_0, window_bounds = array<i64: 512, 2>}, {pipeline_mode = #tpu.pipeline_mode<synchronous>, transform_indices = @transform_1, window_bounds = array<i64: 32, 2>}, {pipeline_mode = #tpu.pipeline_mode<synchronous>, transform_indices = @transform_2, window_bounds = array<i64: 32, 1>}, {pipeline_mode = #tpu.pipeline_mode<synchronous>, transform_indices = @transform_3, window_bounds = array<i64: 32, 32>}, {pipeline_mode = #tpu.pipeline_mode<synchronous>, transform_indices = @transform_4, window_bounds = array<i64: 32, 1>}, {pipeline_mode = #tpu.pipeline_mode<synchronous>, transform_indices = @transform_5, window_bounds = array<i64: 32, 32>}, {pipeline_mode = #tpu.pipeline_mode<synchronous>, transform_indices = @transform_6, window_bounds = array<i64: 32, 1>}, {pipeline_mode = #tpu.pipeline_mode<synchronous>, transform_indices = @transform_7, window_bounds = array<i64: 1, 32>}, {pipeline_mode = #tpu.pipeline_mode<synchronous>, transform_indices = @transform_8, window_bounds = array<i64: 1, 1>}, {transform_indices = @transform_9, window_bounds = array<i64: 1, 512>}]} {
    %c0 = arith.constant 0 : index
    %c0_0 = arith.constant 0 : index
    %0 = vector.load %arg1[%c0, %c0_0] : memref<512x2xf32, #tpu.memory_space<vmem>>, vector<512x2xf32>
    %c0_1 = arith.constant 0 : index
    %c0_2 = arith.constant 0 : index
    %1 = vector.load %arg2[%c0_1, %c0_2] : memref<32x2xf32, #tpu.memory_space<vmem>>, vector<32x2xf32>
    %c0_3 = arith.constant 0 : index
    %c0_4 = arith.constant 0 : index
    %2 = vector.load %arg3[%c0_3, %c0_4] : memref<32x1xf32, #tpu.memory_space<vmem>>, vector<32x1xf32>
    %cst = arith.constant dense<0.000000e+00> : vector<32x512xf32>
    %3 = tpu.matmul %1, %0, %cst {dimension_numbers = #tpu.dot_dimension_numbers<[1], [1], [0], [0], [0, 0, 1, 0], [], []>} : vector<32x2xf32>, vector<512x2xf32>, vector<32x512xf32> -> vector<32x512xf32>
    %4 = vector.broadcast %2 : vector<32x1xf32> to vector<32x512xf32>
    %5 = arith.addf %3, %4 : vector<32x512xf32>
    %6 = arith.negf %5 : vector<32x512xf32>
    %7 = math.exp %6 : vector<32x512xf32>
    %cst_5 = arith.constant 1.000000e+00 : f32
    %8 = vector.broadcast %cst_5 : f32 to vector<32x512xf32>
    %9 = arith.addf %8, %7 : vector<32x512xf32>
    %10 = arith.divf %8, %9 : vector<32x512xf32>
    %11 = arith.mulf %5, %10 : vector<32x512xf32>
    %c0_6 = arith.constant 0 : index
    %c0_7 = arith.constant 0 : index
    %12 = vector.load %arg4[%c0_6, %c0_7] : memref<32x32xf32, #tpu.memory_space<vmem>>, vector<32x32xf32>
    %c0_8 = arith.constant 0 : index
    %c0_9 = arith.constant 0 : index
    %13 = vector.load %arg5[%c0_8, %c0_9] : memref<32x1xf32, #tpu.memory_space<vmem>>, vector<32x1xf32>
    %cst_10 = arith.constant dense<0.000000e+00> : vector<32x512xf32>
    %14 = tpu.matmul %12, %11, %cst_10 {dimension_numbers = #tpu.dot_dimension_numbers<[1], [0], [0], [1], [0, 0, 1, 1], [], []>} : vector<32x32xf32>, vector<32x512xf32>, vector<32x512xf32> -> vector<32x512xf32>
    %15 = vector.broadcast %13 : vector<32x1xf32> to vector<32x512xf32>
    %16 = arith.addf %14, %15 : vector<32x512xf32>
    %17 = arith.negf %16 : vector<32x512xf32>
    %18 = math.exp %17 : vector<32x512xf32>
    %cst_11 = arith.constant 1.000000e+00 : f32
    %19 = vector.broadcast %cst_11 : f32 to vector<32x512xf32>
    %20 = arith.addf %19, %18 : vector<32x512xf32>
    %21 = arith.divf %19, %20 : vector<32x512xf32>
    %22 = arith.mulf %16, %21 : vector<32x512xf32>
    %c0_12 = arith.constant 0 : index
    %c0_13 = arith.constant 0 : index
    %23 = vector.load %arg6[%c0_12, %c0_13] : memref<32x32xf32, #tpu.memory_space<vmem>>, vector<32x32xf32>
    %c0_14 = arith.constant 0 : index
    %c0_15 = arith.constant 0 : index
    %24 = vector.load %arg7[%c0_14, %c0_15] : memref<32x1xf32, #tpu.memory_space<vmem>>, vector<32x1xf32>
    %cst_16 = arith.constant dense<0.000000e+00> : vector<32x512xf32>
    %25 = tpu.matmul %23, %22, %cst_16 {dimension_numbers = #tpu.dot_dimension_numbers<[1], [0], [0], [1], [0, 0, 1, 1], [], []>} : vector<32x32xf32>, vector<32x512xf32>, vector<32x512xf32> -> vector<32x512xf32>
    %26 = vector.broadcast %24 : vector<32x1xf32> to vector<32x512xf32>
    %27 = arith.addf %25, %26 : vector<32x512xf32>
    %28 = arith.negf %27 : vector<32x512xf32>
    %29 = math.exp %28 : vector<32x512xf32>
    %cst_17 = arith.constant 1.000000e+00 : f32
    %30 = vector.broadcast %cst_17 : f32 to vector<32x512xf32>
    %31 = arith.addf %30, %29 : vector<32x512xf32>
    %32 = arith.divf %30, %31 : vector<32x512xf32>
    %33 = arith.mulf %27, %32 : vector<32x512xf32>
    %c0_18 = arith.constant 0 : index
    %c0_19 = arith.constant 0 : index
    %34 = vector.load %arg8[%c0_18, %c0_19] : memref<1x32xf32, #tpu.memory_space<vmem>>, vector<1x32xf32>
    %c0_20 = arith.constant 0 : index
    %c0_21 = arith.constant 0 : index
    %35 = vector.load %arg9[%c0_20, %c0_21] : memref<1x1xf32, #tpu.memory_space<vmem>>, vector<1x1xf32>
    %cst_22 = arith.constant dense<0.000000e+00> : vector<1x512xf32>
    %36 = tpu.matmul %34, %33, %cst_22 {dimension_numbers = #tpu.dot_dimension_numbers<[1], [0], [0], [1], [0, 0, 1, 1], [], []>} : vector<1x32xf32>, vector<32x512xf32>, vector<1x512xf32> -> vector<1x512xf32>
    %37 = vector.broadcast %35 : vector<1x1xf32> to vector<1x512xf32>
    %38 = arith.addf %36, %37 : vector<1x512xf32>
    %c0_23 = arith.constant 0 : index
    %c0_24 = arith.constant 0 : index
    %39 = vector.load %arg10[%c0_23, %c0_24] : memref<1x512xf32, #tpu.memory_space<vmem>>, vector<1x512xf32>
    tpu.vector_store %arg10[%c0_23, %c0_24], %38 {strides = array<i32>} : memref<1x512xf32, #tpu.memory_space<vmem>>, vector<1x512xf32>,
    return
  }
  func.func @transform_0(%arg0: i32) -> (i32, i32) {
    %c0_i32 = arith.constant 0 : i32
    %c0_i32_0 = arith.constant 0 : i32
    return %arg0, %c0_i32 : i32, i32
  }
  func.func @transform_1(%arg0: i32) -> (i32, i32) {
    %c0_i32 = arith.constant 0 : i32
    %c0_i32_0 = arith.constant 0 : i32
    %c0_i32_1 = arith.constant 0 : i32
    return %c0_i32, %c0_i32_0 : i32, i32
  }
  func.func @transform_2(%arg0: i32) -> (i32, i32) {
    %c0_i32 = arith.constant 0 : i32
    %c0_i32_0 = arith.constant 0 : i32
    %c0_i32_1 = arith.constant 0 : i32
    return %c0_i32, %c0_i32_0 : i32, i32
  }
  func.func @transform_3(%arg0: i32) -> (i32, i32) {
    %c0_i32 = arith.constant 0 : i32
    %c0_i32_0 = arith.constant 0 : i32
    %c0_i32_1 = arith.constant 0 : i32
    return %c0_i32, %c0_i32_0 : i32, i32
  }
  func.func @transform_4(%arg0: i32) -> (i32, i32) {
    %c0_i32 = arith.constant 0 : i32
    %c0_i32_0 = arith.constant 0 : i32
    %c0_i32_1 = arith.constant 0 : i32
    return %c0_i32, %c0_i32_0 : i32, i32
  }
  func.func @transform_5(%arg0: i32) -> (i32, i32) {
    %c0_i32 = arith.constant 0 : i32
    %c0_i32_0 = arith.constant 0 : i32
    %c0_i32_1 = arith.constant 0 : i32
    return %c0_i32, %c0_i32_0 : i32, i32
  }
  func.func @transform_6(%arg0: i32) -> (i32, i32) {
    %c0_i32 = arith.constant 0 : i32
    %c0_i32_0 = arith.constant 0 : i32
    %c0_i32_1 = arith.constant 0 : i32
    return %c0_i32, %c0_i32_0 : i32, i32
  }
  func.func @transform_7(%arg0: i32) -> (i32, i32) {
    %c0_i32 = arith.constant 0 : i32
    %c0_i32_0 = arith.constant 0 : i32
    %c0_i32_1 = arith.constant 0 : i32
    return %c0_i32, %c0_i32_0 : i32, i32
  }
  func.func @transform_8(%arg0: i32) -> (i32, i32) {
    %c0_i32 = arith.constant 0 : i32
    %c0_i32_0 = arith.constant 0 : i32
    %c0_i32_1 = arith.constant 0 : i32
    return %c0_i32, %c0_i32_0 : i32, i32
  }
  func.func @transform_9(%arg0: i32) -> (i32, i32) {
    %c0_i32 = arith.constant 0 : i32
    %c0_i32_0 = arith.constant 0 : i32
    return %c0_i32, %arg0 : i32, i32
  }
}

</mosaic_0001>

<llo_original>
// kernel: tpu_custom_call.1
$region0: #{tpu_custom_call.1}
  #allocation0 [shape = 'u32[]', space=smem, size = 0x4, offset = 0x4, fixed_abs, tag = 'smem constant byte address 0x4 - core index']
  #allocation1 [shape = 'u32[144,128]{1,0:T(1,128)}', space=vmem, size = 0x12000, scoped, tag = 'internal scratch']
  #allocation2 [shape = 'f32[1,1]{1,0:T(1,128)S(1)}', space=vmem, size = 0x200, scoped, tag = 'scoped memory for tpu_custom_call.1']
  %s0 = inlined_call_operand.vmem [shape: f32[1024,2], index: 0, kind: input, shape index: {}]
  %s1 = inlined_call_operand.vmem [shape: f32[32,2], index: 1, kind: input, shape index: {}]
  %s2 = inlined_call_operand.vmem [shape: f32[32,1], index: 2, kind: input, shape index: {}]
  %s3 = inlined_call_operand.vmem [shape: f32[32,32], index: 3, kind: input, shape index: {}]
  %s4 = inlined_call_operand.vmem [shape: f32[32,1], index: 4, kind: input, shape index: {}]
  %s5 = inlined_call_operand.vmem [shape: f32[32,32], index: 5, kind: input, shape index: {}]
  %s6 = inlined_call_operand.vmem [shape: f32[32,1], index: 6, kind: input, shape index: {}]
  %s7 = inlined_call_operand.vmem [shape: f32[1,32], index: 7, kind: input, shape index: {}]
  %s8 = inlined_call_operand.<no memory space> [shape: f32[1,1], index: 8, kind: input, shape index: {}]
  %s9 = inlined_call_operand.hbm [shape: f32[1,1024], index: 9, kind: output, shape index: {}]
  %s10 = sld [smem:[#allocation0]]
  $region69: #{tpu_custom_call.1} parent=0
    _
  %s12 = ssub.s32 1, %s10
  %s13 = scalar_select 0, %s12, %s10
  %v14 = vstv %s8
  %15 = vst [vmem:[#allocation2] sm:$0x1] %v14
  $region1: #{tpu_custom_call.1} parent=0
    #allocation3 [shape = 'u8[4096]{0}', space=vmem, size = 0x1000, scoped, tag = 'output window, operand 0']
    #allocation4 [shape = 's32[2]{0}', space=sflag, size = 0x8, scoped, tag = 'scoped memory for tpu_custom_call.1']
    %16 = vsyncpa [#allocation4], 0
    %s17 = scalar_lea.sflag [#allocation4], 1
    %18 = vsyncpa %s17, 0
    loop: start=0, step=1, limit=4
    $region2: #{tpu_custom_call.1} parent=1 // loop_pre_header
      _
    $region3: #{tpu_custom_call.1} parent=1 // loop_header
      %s20 = sphi 0, %s24
      %p21 = scmp.ge.s32.totalorder %s20, 4
      %s30 = sphi 0, %s32
      %s33 = sphi 0, %s30
      %s34 = sphi 0, %s33
      %s50 = sphi 0, %s34
      %s54 = sphi 0, %s54
      %s56 = sphi 0, %s54
      %s57 = sphi 0, %s56
      %s71 = sphi 0, %s57
      %s75 = sphi 0, %s75
      %s77 = sphi 0, %s75
      %s78 = sphi 0, %s77
      %s92 = sphi 0, %s78
      %s96 = sphi 0, %s96
      %s98 = sphi 0, %s96
      %s99 = sphi 0, %s98
      %s113 = sphi 0, %s99
      %s117 = sphi 0, %s117
      %s119 = sphi 0, %s117
      %s120 = sphi 0, %s119
      %s134 = sphi 0, %s120
      %s138 = sphi 0, %s138
      %s140 = sphi 0, %s138
      %s141 = sphi 0, %s140
      %s155 = sphi 0, %s141
      %s159 = sphi 0, %s159
      %s161 = sphi 0, %s159
      %s162 = sphi 0, %s161
      %s176 = sphi 0, %s162
      %s180 = sphi 0, %s180
      %s182 = sphi 0, %s180
      %s183 = sphi 0, %s182
      %s197 = sphi 0, %s183
      %s201 = sphi 0, %s201
      %s203 = sphi 0, %s201
      %s204 = sphi 0, %s203
      %s218 = sphi 0, %s204
      %s224 = sphi 0, %s226
      %s227 = sphi 0, %s224
      %s228 = sphi 0, %s227
      %s244 = sphi 0, %s228
    $region4: #{tpu_custom_call.1} parent=1 // loop_header_branch
      %23 = sbr.rel (%p21) target = $region8
    $region5: #{tpu_custom_call.1} parent=1 // loop_body
      %s25 = ssub.s32 %s20, 1
      %s26 = ssub.s32 %s20, 2
      %s27 = sadd.s32 %s20, 1
      %s28 = ssub.s32 %s20, %s27
      %p29 = scmp.eq.s32.totalorder %s28, 0
      %s31 = sadd.s32 %s30, 1
      %s32 = scalar_select %p29, %s30, %s31
      %p35 = pneg %p29
      %p36 = scmp.eq.s32.totalorder %s20, 1
      %p37 = por %p35, %p36
      %p38 = scmp.ne.s32.totalorder %s30, %s33
      %p39 = scmp.eq.s32.totalorder %s20, 0
      %p40 = por %p38, %p39
      %p41 = scmp.ne.s32.totalorder %s30, %s33
      %p42 = scmp.eq.s32.totalorder %s25, 1
      %p43 = por %p41, %p42
      %p44 = scmp.ne.s32.totalorder %s33, %s34
      %p45 = scmp.eq.s32.totalorder %s25, 0
      %p46 = por %p44, %p45
      %p47 = scmp.ne.s32.totalorder %s33, %s34
      %p48 = scmp.eq.s32.totalorder %s26, 1
      %p49 = por %p47, %p48
      %p51 = scmp.ne.s32.totalorder %s34, %s50
      %p52 = scmp.eq.s32.totalorder %s26, 0
      %p53 = por %p51, %p52
      %s55 = sadd.s32 %s54, 1
      %p58 = scmp.eq.s32.totalorder %s20, 1
      %p59 = scmp.ne.s32.totalorder %s54, %s56
      %p60 = scmp.eq.s32.totalorder %s20, 0
      %p61 = por %p59, %p60
      %p62 = scmp.ne.s32.totalorder %s54, %s56
      %p63 = scmp.eq.s32.totalorder %s25, 1
      %p64 = por %p62, %p63
      %p65 = scmp.ne.s32.totalorder %s56, %s57
      %p66 = scmp.eq.s32.totalorder %s25, 0
      %p67 = por %p65, %p66
      %p68 = scmp.ne.s32.totalorder %s56, %s57
      %p69 = scmp.eq.s32.totalorder %s26, 1
      %p70 = por %p68, %p69
      %p72 = scmp.ne.s32.totalorder %s57, %s71
      %p73 = scmp.eq.s32.totalorder %s26, 0
      %p74 = por %p72, %p73
      %s76 = sadd.s32 %s75, 1
      %p79 = scmp.eq.s32.totalorder %s20, 1
      %p80 = scmp.ne.s32.totalorder %s75, %s77
      %p81 = scmp.eq.s32.totalorder %s20, 0
      %p82 = por %p80, %p81
      %p83 = scmp.ne.s32.totalorder %s75, %s77
      %p84 = scmp.eq.s32.totalorder %s25, 1
      %p85 = por %p83, %p84
      %p86 = scmp.ne.s32.totalorder %s77, %s78
      %p87 = scmp.eq.s32.totalorder %s25, 0
      %p88 = por %p86, %p87
      %p89 = scmp.ne.s32.totalorder %s77, %s78
      %p90 = scmp.eq.s32.totalorder %s26, 1
      %p91 = por %p89, %p90
      %p93 = scmp.ne.s32.totalorder %s78, %s92
      %p94 = scmp.eq.s32.totalorder %s26, 0
      %p95 = por %p93, %p94
      %s97 = sadd.s32 %s96, 1
      %p100 = scmp.eq.s32.totalorder %s20, 1
      %p101 = scmp.ne.s32.totalorder %s96, %s98
      %p102 = scmp.eq.s32.totalorder %s20, 0
      %p103 = por %p101, %p102
      %p104 = scmp.ne.s32.totalorder %s96, %s98
      %p105 = scmp.eq.s32.totalorder %s25, 1
      %p106 = por %p104, %p105
      %p107 = scmp.ne.s32.totalorder %s98, %s99
      %p108 = scmp.eq.s32.totalorder %s25, 0
      %p109 = por %p107, %p108
      %p110 = scmp.ne.s32.totalorder %s98, %s99
      %p111 = scmp.eq.s32.totalorder %s26, 1
      %p112 = por %p110, %p111
      %p114 = scmp.ne.s32.totalorder %s99, %s113
      %p115 = scmp.eq.s32.totalorder %s26, 0
      %p116 = por %p114, %p115
      %s118 = sadd.s32 %s117, 1
      %p121 = scmp.eq.s32.totalorder %s20, 1
      %p122 = scmp.ne.s32.totalorder %s117, %s119
      %p123 = scmp.eq.s32.totalorder %s20, 0
      %p124 = por %p122, %p123
      %p125 = scmp.ne.s32.totalorder %s117, %s119
      %p126 = scmp.eq.s32.totalorder %s25, 1
      %p127 = por %p125, %p126
      %p128 = scmp.ne.s32.totalorder %s119, %s120
      %p129 = scmp.eq.s32.totalorder %s25, 0
      %p130 = por %p128, %p129
      %p131 = scmp.ne.s32.totalorder %s119, %s120
      %p132 = scmp.eq.s32.totalorder %s26, 1
      %p133 = por %p131, %p132
      %p135 = scmp.ne.s32.totalorder %s120, %s134
      %p136 = scmp.eq.s32.totalorder %s26, 0
      %p137 = por %p135, %p136
      %s139 = sadd.s32 %s138, 1
      %p142 = scmp.eq.s32.totalorder %s20, 1
      %p143 = scmp.ne.s32.totalorder %s138, %s140
      %p144 = scmp.eq.s32.totalorder %s20, 0
      %p145 = por %p143, %p144
      %p146 = scmp.ne.s32.totalorder %s138, %s140
      %p147 = scmp.eq.s32.totalorder %s25, 1
      %p148 = por %p146, %p147
      %p149 = scmp.ne.s32.totalorder %s140, %s141
      %p150 = scmp.eq.s32.totalorder %s25, 0
      %p151 = por %p149, %p150
      %p152 = scmp.ne.s32.totalorder %s140, %s141
      %p153 = scmp.eq.s32.totalorder %s26, 1
      %p154 = por %p152, %p153
      %p156 = scmp.ne.s32.totalorder %s141, %s155
      %p157 = scmp.eq.s32.totalorder %s26, 0
      %p158 = por %p156, %p157
      %s160 = sadd.s32 %s159, 1
      %p163 = scmp.eq.s32.totalorder %s20, 1
      %p164 = scmp.ne.s32.totalorder %s159, %s161
      %p165 = scmp.eq.s32.totalorder %s20, 0
      %p166 = por %p164, %p165
      %p167 = scmp.ne.s32.totalorder %s159, %s161
      %p168 = scmp.eq.s32.totalorder %s25, 1
      %p169 = por %p167, %p168
      %p170 = scmp.ne.s32.totalorder %s161, %s162
      %p171 = scmp.eq.s32.totalorder %s25, 0
      %p172 = por %p170, %p171
      %p173 = scmp.ne.s32.totalorder %s161, %s162
      %p174 = scmp.eq.s32.totalorder %s26, 1
      %p175 = por %p173, %p174
      %p177 = scmp.ne.s32.totalorder %s162, %s176
      %p178 = scmp.eq.s32.totalorder %s26, 0
      %p179 = por %p177, %p178
      %s181 = sadd.s32 %s180, 1
      %p184 = scmp.eq.s32.totalorder %s20, 1
      %p185 = scmp.ne.s32.totalorder %s180, %s182
      %p186 = scmp.eq.s32.totalorder %s20, 0
      %p187 = por %p185, %p186
      %p188 = scmp.ne.s32.totalorder %s180, %s182
      %p189 = scmp.eq.s32.totalorder %s25, 1
      %p190 = por %p188, %p189
      %p191 = scmp.ne.s32.totalorder %s182, %s183
      %p192 = scmp.eq.s32.totalorder %s25, 0
      %p193 = por %p191, %p192
      %p194 = scmp.ne.s32.totalorder %s182, %s183
      %p195 = scmp.eq.s32.totalorder %s26, 1
      %p196 = por %p194, %p195
      %p198 = scmp.ne.s32.totalorder %s183, %s197
      %p199 = scmp.eq.s32.totalorder %s26, 0
      %p200 = por %p198, %p199
      %s202 = sadd.s32 %s201, 1
      %p205 = scmp.eq.s32.totalorder %s20, 1
      %p206 = scmp.ne.s32.totalorder %s201, %s203
      %p207 = scmp.eq.s32.totalorder %s20, 0
      %p208 = por %p206, %p207
      %p209 = scmp.ne.s32.totalorder %s201, %s203
      %p210 = scmp.eq.s32.totalorder %s25, 1
      %p211 = por %p209, %p210
      %p212 = scmp.ne.s32.totalorder %s203, %s204
      %p213 = scmp.eq.s32.totalorder %s25, 0
      %p214 = por %p212, %p213
      %p215 = scmp.ne.s32.totalorder %s203, %s204
      %p216 = scmp.eq.s32.totalorder %s26, 1
      %p217 = por %p215, %p216
      %p219 = scmp.ne.s32.totalorder %s204, %s218
      %p220 = scmp.eq.s32.totalorder %s26, 0
      %p221 = por %p219, %p220
      %s222 = ssub.s32 %s20, %s27
      %p223 = scmp.eq.s32.totalorder %s222, 0
      %s225 = sadd.s32 %s224, 1
      %s226 = scalar_select %p223, %s224, %s225
      %p229 = pneg %p223
      %p230 = scmp.eq.s32.totalorder %s20, 1
      %p231 = por %p229, %p230
      %p232 = scmp.ne.s32.totalorder %s224, %s227
      %p233 = scmp.eq.s32.totalorder %s20, 0
      %p234 = por %p232, %p233
      %p235 = scmp.ne.s32.totalorder %s224, %s227
      %p236 = scmp.eq.s32.totalorder %s25, 1
      %p237 = por %p235, %p236
      %p238 = scmp.ne.s32.totalorder %s227, %s228
      %p239 = scmp.eq.s32.totalorder %s25, 0
      %p240 = por %p238, %p239
      %p241 = scmp.ne.s32.totalorder %s227, %s228
      %p242 = scmp.eq.s32.totalorder %s26, 1
      %p243 = por %p241, %p242
      %p245 = scmp.ne.s32.totalorder %s228, %s244
      %p246 = scmp.eq.s32.totalorder %s26, 0
      %p247 = por %p245, %p246
      %p248 = scmp.le.s32.totalorder 1, %s20
      %p249 = scmp.lt.s32.totalorder %s20, 3
      %p250 = pnand %p248, %p249
      %p251 = pneg %p250
      // Predicated region
      $region9: #{tpu_custom_call.1} parent=5 // pred_check
        _
      $region10: #{tpu_custom_call.1} parent=5 // pred_check_branch
        %253 = sbr.rel (%p250) target = $region12
      $region11: #{tpu_custom_call.1} parent=5 // pred_region
        %s254 = ssub.s32 %s20, 1
        // Predicated region
        $region13: #{tpu_custom_call.1} parent=11 // pred_check
          %p255 = pneg %p67
        $region14: #{tpu_custom_call.1} parent=11 // pred_check_branch
          %257 = sbr.rel (%p255) target = $region16
        $region15: #{tpu_custom_call.1} parent=11 // pred_region
          _
        $region16: #{tpu_custom_call.1} parent=11 // pred_fallthru
          _
        // Predicated region
        $region17: #{tpu_custom_call.1} parent=11 // pred_check
          %p258 = pneg %p88
        $region18: #{tpu_custom_call.1} parent=11 // pred_check_branch
          %260 = sbr.rel (%p258) target = $region20
        $region19: #{tpu_custom_call.1} parent=11 // pred_region
          _
        $region20: #{tpu_custom_call.1} parent=11 // pred_fallthru
          _
        // Predicated region
        $region21: #{tpu_custom_call.1} parent=11 // pred_check
          %p261 = pneg %p109
        $region22: #{tpu_custom_call.1} parent=11 // pred_check_branch
          %263 = sbr.rel (%p261) target = $region24
        $region23: #{tpu_custom_call.1} parent=11 // pred_region
          _
        $region24: #{tpu_custom_call.1} parent=11 // pred_fallthru
          _
        // Predicated region
        $region25: #{tpu_custom_call.1} parent=11 // pred_check
          %p264 = pneg %p130
        $region26: #{tpu_custom_call.1} parent=11 // pred_check_branch
          %266 = sbr.rel (%p264) target = $region28
        $region27: #{tpu_custom_call.1} parent=11 // pred_region
          _
        $region28: #{tpu_custom_call.1} parent=11 // pred_fallthru
          _
        // Predicated region
        $region29: #{tpu_custom_call.1} parent=11 // pred_check
          %p267 = pneg %p151
        $region30: #{tpu_custom_call.1} parent=11 // pred_check_branch
          %269 = sbr.rel (%p267) target = $region32
        $region31: #{tpu_custom_call.1} parent=11 // pred_region
          _
        $region32: #{tpu_custom_call.1} parent=11 // pred_fallthru
          _
        // Predicated region
        $region33: #{tpu_custom_call.1} parent=11 // pred_check
          %p270 = pneg %p172
        $region34: #{tpu_custom_call.1} parent=11 // pred_check_branch
          %272 = sbr.rel (%p270) target = $region36
        $region35: #{tpu_custom_call.1} parent=11 // pred_region
          _
        $region36: #{tpu_custom_call.1} parent=11 // pred_fallthru
          _
        // Predicated region
        $region37: #{tpu_custom_call.1} parent=11 // pred_check
          %p273 = pneg %p193
        $region38: #{tpu_custom_call.1} parent=11 // pred_check_branch
          %275 = sbr.rel (%p273) target = $region40
        $region39: #{tpu_custom_call.1} parent=11 // pred_region
          _
        $region40: #{tpu_custom_call.1} parent=11 // pred_fallthru
          _
        // Predicated region
        $region41: #{tpu_custom_call.1} parent=11 // pred_check
          %p276 = pneg %p214
        $region42: #{tpu_custom_call.1} parent=11 // pred_check_branch
          %278 = sbr.rel (%p276) target = $region44
        $region43: #{tpu_custom_call.1} parent=11 // pred_region
          _
        $region44: #{tpu_custom_call.1} parent=11 // pred_fallthru
          _
      $region12: #{tpu_custom_call.1} parent=5 // pred_fallthru
        _
      %p279 = scmp.lt.s32.totalorder %s20, 2
      // Predicated region
      $region45: #{tpu_custom_call.1} parent=5 // pred_check
        %p280 = pneg %p279
      $region46: #{tpu_custom_call.1} parent=5 // pred_check_branch
        %282 = sbr.rel (%p280) target = $region48
      $region47: #{tpu_custom_call.1} parent=5 // pred_region
        // Predicated region
        $region49: #{tpu_custom_call.1} parent=47 // pred_check
          %p283 = pneg %p40
        $region50: #{tpu_custom_call.1} parent=47 // pred_check_branch
          %285 = sbr.rel (%p283) target = $region52
        $region51: #{tpu_custom_call.1} parent=47 // pred_region
          %s286 = smul.u32 64, %s20
          %p287 = scmp.lt.s32.totalorder %s286, 127
          %s288 = scalar_select %p287, %s286, 127
          %s289 = smul.addr %s288, 8
          %s290 = scalar_lea.vmem %s0, %s289
          %s291 = smul.u32 64, %s20
        $region52: #{tpu_custom_call.1} parent=47 // pred_fallthru
          _
      $region48: #{tpu_custom_call.1} parent=5 // pred_fallthru
        _
      %p292 = scmp.le.s32.totalorder 1, %s20
      %p293 = scmp.lt.s32.totalorder %s20, 3
      %p294 = pnand %p292, %p293
      %p295 = pneg %p294
      // Predicated region
      $region53: #{tpu_custom_call.1} parent=5 // pred_check
        _
      $region54: #{tpu_custom_call.1} parent=5 // pred_check_branch
        %297 = sbr.rel (%p294) target = $region56
      $region55: #{tpu_custom_call.1} parent=5 // pred_region
        %s298 = ssub.s32 %s20, 1
        %s299 = smul.u32 64, %s25
        %p300 = scmp.lt.s32.totalorder %s299, 127
        %s301 = scalar_select %p300, %s299, 127
        %s302 = smul.addr %s301, 8
        %s303 = scalar_lea.vmem %s0, %s302
        %p304 = pneg %p46
        %p305 = pneg %p43
        %p306 = pneg %p67
        %p307 = pneg %p64
        %p308 = pneg %p88
        %p309 = pneg %p85
        %p310 = pneg %p109
        %p311 = pneg %p106
        %p312 = pneg %p130
        %p313 = pneg %p127
        %p314 = pneg %p151
        %p315 = pneg %p148
        %p316 = pneg %p172
        %p317 = pneg %p169
        %p318 = pneg %p193
        %p319 = pneg %p190
        %p320 = pneg %p214
        %p321 = pneg %p211
        %p322 = pneg %p240
        %p323 = pneg %p237
        %s324 = sand.u32 %s227, 1
        %s325 = scalar_lea.sflag [#allocation4], %s324
        %s326 = sand.u32 %s227, 1
        %s327 = smul.addr %s326, 4
        %s328 = scalar_lea.vmem [#allocation3], %s327
        %s329 = smul.u32 64, %s25
        %p330 = scmp.lt.s32.totalorder %s329, 127
        %s331 = scalar_select %p330, %s329, 127
        %s332 = smul.addr %s331, 8
        %s333 = scalar_lea.vmem %s0, %s332
        %s334 = smul.u32 64, %s25
        %s335 = smul.u32 4, %s25
        %v336 = vld [vmem:[%s333] sm:$0xff]
        %v337 = vld [vmem:[%s333 + $0x8] sm:$0xff]
        %v338 = vld [vmem:[%s333 + $0x10] sm:$0xff]
        %v339 = vld [vmem:[%s333 + $0x18] sm:$0xff]
        %v340 = vld [vmem:[%s333 + $0x20] sm:$0xff]
        %v341 = vld [vmem:[%s333 + $0x28] sm:$0xff]
        %v342 = vld [vmem:[%s333 + $0x30] sm:$0xff]
        %v343 = vld [vmem:[%s333 + $0x38] sm:$0xff]
        %v344 = vld [vmem:[%s333 + $0x40] sm:$0xff]
        %v345 = vld [vmem:[%s333 + $0x48] sm:$0xff]
        %v346 = vld [vmem:[%s333 + $0x50] sm:$0xff]
        %v347 = vld [vmem:[%s333 + $0x58] sm:$0xff]
        %v348 = vld [vmem:[%s333 + $0x60] sm:$0xff]
        %v349 = vld [vmem:[%s333 + $0x68] sm:$0xff]
        %v350 = vld [vmem:[%s333 + $0x70] sm:$0xff]
        %v351 = vld [vmem:[%s333 + $0x78] sm:$0xff]
        %v352 = vld [vmem:[%s333 + $0x80] sm:$0xff]
        %v353 = vld [vmem:[%s333 + $0x88] sm:$0xff]
        %v354 = vld [vmem:[%s333 + $0x90] sm:$0xff]
        %v355 = vld [vmem:[%s333 + $0x98] sm:$0xff]
        %v356 = vld [vmem:[%s333 + $0xa0] sm:$0xff]
        %v357 = vld [vmem:[%s333 + $0xa8] sm:$0xff]
        %v358 = vld [vmem:[%s333 + $0xb0] sm:$0xff]
        %v359 = vld [vmem:[%s333 + $0xb8] sm:$0xff]
        %v360 = vld [vmem:[%s333 + $0xc0] sm:$0xff]
        %v361 = vld [vmem:[%s333 + $0xc8] sm:$0xff]
        %v362 = vld [vmem:[%s333 + $0xd0] sm:$0xff]
        %v363 = vld [vmem:[%s333 + $0xd8] sm:$0xff]
        %v364 = vld [vmem:[%s333 + $0xe0] sm:$0xff]
        %v365 = vld [vmem:[%s333 + $0xe8] sm:$0xff]
        %v366 = vld [vmem:[%s333 + $0xf0] sm:$0xff]
        %v367 = vld [vmem:[%s333 + $0xf8] sm:$0xff]
        %v368 = vld [vmem:[%s333 + $0x100] sm:$0xff]
        %v369 = vld [vmem:[%s333 + $0x108] sm:$0xff]
        %v370 = vld [vmem:[%s333 + $0x110] sm:$0xff]
        %v371 = vld [vmem:[%s333 + $0x118] sm:$0xff]
        %v372 = vld [vmem:[%s333 + $0x120] sm:$0xff]
        %v373 = vld [vmem:[%s333 + $0x128] sm:$0xff]
        %v374 = vld [vmem:[%s333 + $0x130] sm:$0xff]
        %v375 = vld [vmem:[%s333 + $0x138] sm:$0xff]
        %v376 = vld [vmem:[%s333 + $0x140] sm:$0xff]
        %v377 = vld [vmem:[%s333 + $0x148] sm:$0xff]
        %v378 = vld [vmem:[%s333 + $0x150] sm:$0xff]
        %v379 = vld [vmem:[%s333 + $0x158] sm:$0xff]
        %v380 = vld [vmem:[%s333 + $0x160] sm:$0xff]
        %v381 = vld [vmem:[%s333 + $0x168] sm:$0xff]
        %v382 = vld [vmem:[%s333 + $0x170] sm:$0xff]
        %v383 = vld [vmem:[%s333 + $0x178] sm:$0xff]
        %v384 = vld [vmem:[%s333 + $0x180] sm:$0xff]
        %v385 = vld [vmem:[%s333 + $0x188] sm:$0xff]
        %v386 = vld [vmem:[%s333 + $0x190] sm:$0xff]
        %v387 = vld [vmem:[%s333 + $0x198] sm:$0xff]
        %v388 = vld [vmem:[%s333 + $0x1a0] sm:$0xff]
        %v389 = vld [vmem:[%s333 + $0x1a8] sm:$0xff]
        %v390 = vld [vmem:[%s333 + $0x1b0] sm:$0xff]
        %v391 = vld [vmem:[%s333 + $0x1b8] sm:$0xff]
        %v392 = vld [vmem:[%s333 + $0x1c0] sm:$0xff]
        %v393 = vld [vmem:[%s333 + $0x1c8] sm:$0xff]
        %v394 = vld [vmem:[%s333 + $0x1d0] sm:$0xff]
        %v395 = vld [vmem:[%s333 + $0x1d8] sm:$0xff]
        %v396 = vld [vmem:[%s333 + $0x1e0] sm:$0xff]
        %v397 = vld [vmem:[%s333 + $0x1e8] sm:$0xff]
        %v398 = vld [vmem:[%s333 + $0x1f0] sm:$0xff]
        %v399 = vld [vmem:[%s333 + $0x1f8] sm:$0xff]
        %v400 = vld [vmem:[%s1] sm:$0xff]
        %v401 = vld [vmem:[%s1 + $0x8] sm:$0xff]
        %v402 = vld [vmem:[%s1 + $0x10] sm:$0xff]
        %v403 = vld [vmem:[%s1 + $0x18] sm:$0xff]
        %v404 = vld [vmem:[%s2] sm:$0xff]
        %v405 = vld [vmem:[%s2 + $0x8] sm:$0xff]
        %v406 = vld [vmem:[%s2 + $0x10] sm:$0xff]
        %v407 = vld [vmem:[%s2 + $0x18] sm:$0xff]
        %409 = vset.pattern.permute.xlu0 0
        %410 = vperm.xlu0 %409, %v404
        %v411 = vpop.permute.xlu0 %410
        %414 = vset.pattern.permute.xlu0 0
        %415 = vperm.xlu0 %414, %v405
        %v416 = vpop.permute.xlu0 %415
        %419 = vset.pattern.permute.xlu0 0
        %420 = vperm.xlu0 %419, %v406
        %v421 = vpop.permute.xlu0 %420
        %424 = vset.pattern.permute.xlu0 0
        %425 = vperm.xlu0 %424, %v407
        %v426 = vpop.permute.xlu0 %425
        %vm428 = vcmask 15360
        %v430 = vsel %vm428, %v400, 0
        %v433 = vsel %vm428, %v401, 0
        %v436 = vsel %vm428, %v402, 0
        %v439 = vsel %vm428, %v403, 0
        %v442 = vsel %vm428, %v336, 0
        %v445 = vsel %vm428, %v337, 0
        %v448 = vsel %vm428, %v338, 0
        %v451 = vsel %vm428, %v339, 0
        %v454 = vsel %vm428, %v340, 0
        %v457 = vsel %vm428, %v341, 0
        %v460 = vsel %vm428, %v342, 0
        %v463 = vsel %vm428, %v343, 0
        %v466 = vsel %vm428, %v344, 0
        %v469 = vsel %vm428, %v345, 0
        %v472 = vsel %vm428, %v346, 0
        %v475 = vsel %vm428, %v347, 0
        %v478 = vsel %vm428, %v348, 0
        %v481 = vsel %vm428, %v349, 0
        %v484 = vsel %vm428, %v350, 0
        %v487 = vsel %vm428, %v351, 0
        %v490 = vsel %vm428, %v352, 0
        %v493 = vsel %vm428, %v353, 0
        %v496 = vsel %vm428, %v354, 0
        %v499 = vsel %vm428, %v355, 0
        %v502 = vsel %vm428, %v356, 0
        %v505 = vsel %vm428, %v357, 0
        %v508 = vsel %vm428, %v358, 0
        %v511 = vsel %vm428, %v359, 0
        %v514 = vsel %vm428, %v360, 0
        %v517 = vsel %vm428, %v361, 0
        %v520 = vsel %vm428, %v362, 0
        %v523 = vsel %vm428, %v363, 0
        %v526 = vsel %vm428, %v364, 0
        %v529 = vsel %vm428, %v365, 0
        %v532 = vsel %vm428, %v366, 0
        %v535 = vsel %vm428, %v367, 0
        %v538 = vsel %vm428, %v368, 0
        %v541 = vsel %vm428, %v369, 0
        %v544 = vsel %vm428, %v370, 0
        %v547 = vsel %vm428, %v371, 0
        %v550 = vsel %vm428, %v372, 0
        %v553 = vsel %vm428, %v373, 0
        %v556 = vsel %vm428, %v374, 0
        %v559 = vsel %vm428, %v375, 0
        %v562 = vsel %vm428, %v376, 0
        %v565 = vsel %vm428, %v377, 0
        %v568 = vsel %vm428, %v378, 0
        %v571 = vsel %vm428, %v379, 0
        %v574 = vsel %vm428, %v380, 0
        %v577 = vsel %vm428, %v381, 0
        %v580 = vsel %vm428, %v382, 0
        %v583 = vsel %vm428, %v383, 0
        %v586 = vsel %vm428, %v384, 0
        %v589 = vsel %vm428, %v385, 0
        %v592 = vsel %vm428, %v386, 0
        %v595 = vsel %vm428, %v387, 0
        %v598 = vsel %vm428, %v388, 0
        %v601 = vsel %vm428, %v389, 0
        %v604 = vsel %vm428, %v390, 0
        %v607 = vsel %vm428, %v391, 0
        %v610 = vsel %vm428, %v392, 0
        %v613 = vsel %vm428, %v393, 0
        %v616 = vsel %vm428, %v394, 0
        %v619 = vsel %vm428, %v395, 0
        %v622 = vsel %vm428, %v396, 0
        %v625 = vsel %vm428, %v397, 0
        %v628 = vsel %vm428, %v398, 0
        %v631 = vsel %vm428, %v399, 0
        %633 = vmatprep.subr.mxu0 0.0
        %634 = vmatpush1.xpose.msra.mxu0 %v442
        %635 = vmatprep.subr.mxu0 0.0
        %636 = vmatpush1.xpose.msra.mxu0 %v445
        %637 = vmatprep.subr.mxu0 0.0
        %638 = vmatpush1.xpose.msra.mxu0 %v448
        %639 = vmatprep.subr.mxu0 0.0
        %640 = vmatpush1.xpose.msra.mxu0 %v451
        %641 = vmatprep.subr.mxu0 0.0
        %642 = vmatpush1.xpose.msra.mxu0 %v454
        %643 = vmatprep.subr.mxu0 0.0
        %644 = vmatpush1.xpose.msra.mxu0 %v457
        %645 = vmatprep.subr.mxu0 0.0
        %646 = vmatpush1.xpose.msra.mxu0 %v460
        %647 = vmatprep.subr.mxu0 0.0
        %648 = vmatpush1.xpose.msra.mxu0 %v463
        %649 = vmatprep.subr.mxu0 0.0
        %650 = vmatpush1.xpose.msra.mxu0 %v466
        %651 = vmatprep.subr.mxu0 0.0
        %652 = vmatpush1.xpose.msra.mxu0 %v469
        %653 = vmatprep.subr.mxu0 0.0
        %654 = vmatpush1.xpose.msra.mxu0 %v472
        %655 = vmatprep.subr.mxu0 0.0
        %656 = vmatpush1.xpose.msra.mxu0 %v475
        %657 = vmatprep.subr.mxu0 0.0
        %658 = vmatpush1.xpose.msra.mxu0 %v478
        %659 = vmatprep.subr.mxu0 0.0
        %660 = vmatpush1.xpose.msra.mxu0 %v481
        %661 = vmatprep.subr.mxu0 0.0
        %662 = vmatpush1.xpose.msra.mxu0 %v484
        %663 = vmatprep.subr.mxu0 0.0
        %664 = vmatpush1.xpose.msra.mxu0 %v487
        %665 = vmatprep.subr.mxu0 0.0
        %666 = vmatpush1.xpose.msra.mxu0 %v490
        %667 = vmatprep.subr.mxu0 0.0
        %668 = vmatpush1.xpose.msra.mxu0 %v493
        %669 = vmatprep.subr.mxu0 0.0
        %670 = vmatpush1.xpose.msra.mxu0 %v496
        %671 = vmatprep.subr.mxu0 0.0
        %672 = vmatpush1.xpose.msra.mxu0 %v499
        %673 = vmatprep.subr.mxu0 0.0
        %674 = vmatpush1.xpose.msra.mxu0 %v502
        %675 = vmatprep.subr.mxu0 0.0
        %676 = vmatpush1.xpose.msra.mxu0 %v505
        %677 = vmatprep.subr.mxu0 0.0
        %678 = vmatpush1.xpose.msra.mxu0 %v508
        %679 = vmatprep.subr.mxu0 0.0
        %680 = vmatpush1.xpose.msra.mxu0 %v511
        %681 = vmatprep.subr.mxu0 0.0
        %682 = vmatpush1.xpose.msra.mxu0 %v514
        %683 = vmatprep.subr.mxu0 0.0
        %684 = vmatpush1.xpose.msra.mxu0 %v517
        %685 = vmatprep.subr.mxu0 0.0
        %686 = vmatpush1.xpose.msra.mxu0 %v520
        %687 = vmatprep.subr.mxu0 0.0
        %688 = vmatpush1.xpose.msra.mxu0 %v523
        %689 = vmatprep.subr.mxu0 0.0
        %690 = vmatpush1.xpose.msra.mxu0 %v526
        %691 = vmatprep.subr.mxu0 0.0
        %692 = vmatpush1.xpose.msra.mxu0 %v529
        %693 = vmatprep.subr.mxu0 0.0
        %694 = vmatpush1.xpose.msra.mxu0 %v532
        %695 = vmatprep.subr.mxu0 0.0
        %696 = vmatpush1.xpose.msra.mxu0 %v535
        %697 = vmatprep.mubr.f32.mxu0 0.0
        %698 = vmatmul.mubr.f32.gmra.mrb[0].mxu0 %v430
        %v699 = vpop.f32.mrb[0].mxu0
        %v700 = vadd.f32 %v411, %v699
        %v701 = vpop.f32.mrb[0].mxu0
        %v702 = vadd.f32 %v411, %v701
        %703 = vmatprep.mubr.f32.mxu0 0.0
        %704 = vmatmul.mubr.f32.gmra.mrb[0].mxu0 %v433
        %v705 = vpop.f32.mrb[0].mxu0
        %v706 = vadd.f32 %v416, %v705
        %v707 = vpop.f32.mrb[0].mxu0
        %v708 = vadd.f32 %v416, %v707
        %709 = vmatprep.mubr.f32.mxu0 0.0
        %710 = vmatmul.mubr.f32.gmra.mrb[0].mxu0 %v436
        %v711 = vpop.f32.mrb[0].mxu0
        %v712 = vadd.f32 %v421, %v711
        %v713 = vpop.f32.mrb[0].mxu0
        %v714 = vadd.f32 %v421, %v713
        %715 = vmatprep.mubr.f32.mxu0 0.0
        %716 = vmatmul.mubr.f32.gmra.mrb[0].mxu0 %v439
        %v717 = vpop.f32.mrb[0].mxu0
        %v718 = vadd.f32 %v426, %v717
        %v719 = vpop.f32.mrb[0].mxu0
        %v720 = vadd.f32 %v426, %v719
        %721 = vdwg.mxu0
        %722 = vmatprep.subr.mxu0 0.0
        %723 = vmatpush1.xpose.msra.mxu0 %v538
        %724 = vmatprep.subr.mxu0 0.0
        %725 = vmatpush1.xpose.msra.mxu0 %v541
        %726 = vmatprep.subr.mxu0 0.0
        %727 = vmatpush1.xpose.msra.mxu0 %v544
        %728 = vmatprep.subr.mxu0 0.0
        %729 = vmatpush1.xpose.msra.mxu0 %v547
        %730 = vmatprep.subr.mxu0 0.0
        %731 = vmatpush1.xpose.msra.mxu0 %v550
        %732 = vmatprep.subr.mxu0 0.0
        %733 = vmatpush1.xpose.msra.mxu0 %v553
        %734 = vmatprep.subr.mxu0 0.0
        %735 = vmatpush1.xpose.msra.mxu0 %v556
        %736 = vmatprep.subr.mxu0 0.0
        %737 = vmatpush1.xpose.msra.mxu0 %v559
        %738 = vmatprep.subr.mxu0 0.0
        %739 = vmatpush1.xpose.msra.mxu0 %v562
        %740 = vmatprep.subr.mxu0 0.0
        %741 = vmatpush1.xpose.msra.mxu0 %v565
        %742 = vmatprep.subr.mxu0 0.0
        %743 = vmatpush1.xpose.msra.mxu0 %v568
        %744 = vmatprep.subr.mxu0 0.0
        %745 = vmatpush1.xpose.msra.mxu0 %v571
        %746 = vmatprep.subr.mxu0 0.0
        %747 = vmatpush1.xpose.msra.mxu0 %v574
        %748 = vmatprep.subr.mxu0 0.0
        %749 = vmatpush1.xpose.msra.mxu0 %v577
        %750 = vmatprep.subr.mxu0 0.0
        %751 = vmatpush1.xpose.msra.mxu0 %v580
        %752 = vmatprep.subr.mxu0 0.0
        %753 = vmatpush1.xpose.msra.mxu0 %v583
        %754 = vmatprep.subr.mxu0 0.0
        %755 = vmatpush1.xpose.msra.mxu0 %v586
        %756 = vmatprep.subr.mxu0 0.0
        %757 = vmatpush1.xpose.msra.mxu0 %v589
        %758 = vmatprep.subr.mxu0 0.0
        %759 = vmatpush1.xpose.msra.mxu0 %v592
        %760 = vmatprep.subr.mxu0 0.0
        %761 = vmatpush1.xpose.msra.mxu0 %v595
        %762 = vmatprep.subr.mxu0 0.0
        %763 = vmatpush1.xpose.msra.mxu0 %v598
        %764 = vmatprep.subr.mxu0 0.0
        %765 = vmatpush1.xpose.msra.mxu0 %v601
        %766 = vmatprep.subr.mxu0 0.0
        %767 = vmatpush1.xpose.msra.mxu0 %v604
        %768 = vmatprep.subr.mxu0 0.0
        %769 = vmatpush1.xpose.msra.mxu0 %v607
        %770 = vmatprep.subr.mxu0 0.0
        %771 = vmatpush1.xpose.msra.mxu0 %v610
        %772 = vmatprep.subr.mxu0 0.0
        %773 = vmatpush1.xpose.msra.mxu0 %v613
        %774 = vmatprep.subr.mxu0 0.0
        %775 = vmatpush1.xpose.msra.mxu0 %v616
        %776 = vmatprep.subr.mxu0 0.0
        %777 = vmatpush1.xpose.msra.mxu0 %v619
        %778 = vmatprep.subr.mxu0 0.0
        %779 = vmatpush1.xpose.msra.mxu0 %v622
        %780 = vmatprep.subr.mxu0 0.0
        %781 = vmatpush1.xpose.msra.mxu0 %v625
        %782 = vmatprep.subr.mxu0 0.0
        %783 = vmatpush1.xpose.msra.mxu0 %v628
        %784 = vmatprep.subr.mxu0 0.0
        %785 = vmatpush1.xpose.msra.mxu0 %v631
        %786 = vmatprep.mubr.f32.mxu0 0.0
        %787 = vmatmul.mubr.f32.gmra.mrb[0].mxu0 %v430
        %v788 = vpop.f32.mrb[0].mxu0
        %v789 = vadd.f32 %v411, %v788
        %v790 = vpop.f32.mrb[0].mxu0
        %v791 = vadd.f32 %v411, %v790
        %792 = vmatprep.mubr.f32.mxu0 0.0
        %793 = vmatmul.mubr.f32.gmra.mrb[0].mxu0 %v433
        %v794 = vpop.f32.mrb[0].mxu0
        %v795 = vadd.f32 %v416, %v794
        %v796 = vpop.f32.mrb[0].mxu0
        %v797 = vadd.f32 %v416, %v796
        %798 = vmatprep.mubr.f32.mxu0 0.0
        %799 = vmatmul.mubr.f32.gmra.mrb[0].mxu0 %v436
        %v800 = vpop.f32.mrb[0].mxu0
        %v801 = vadd.f32 %v421, %v800
        %v802 = vpop.f32.mrb[0].mxu0
        %v803 = vadd.f32 %v421, %v802
        %804 = vmatprep.mubr.f32.mxu0 0.0
        %805 = vmatmul.mubr.f32.gmra.mrb[0].mxu0 %v439
        %v806 = vpop.f32.mrb[0].mxu0
        %v807 = vadd.f32 %v426, %v806
        %v808 = vpop.f32.mrb[0].mxu0
        %v809 = vadd.f32 %v426, %v808
        %810 = vdwg.mxu0
        %v811 = vxor.u32 %v700, 2147483648
        %v812 = vxor.u32 %v702, 2147483648
        %v813 = vxor.u32 %v789, 2147483648
        %v814 = vxor.u32 %v791, 2147483648
        %v815 = vxor.u32 %v706, 2147483648
        %v816 = vxor.u32 %v708, 2147483648
        %v817 = vxor.u32 %v795, 2147483648
        %v818 = vxor.u32 %v797, 2147483648
        %v819 = vxor.u32 %v712, 2147483648
        %v820 = vxor.u32 %v714, 2147483648
        %v821 = vxor.u32 %v801, 2147483648
        %v822 = vxor.u32 %v803, 2147483648
        %v823 = vxor.u32 %v718, 2147483648
        %v824 = vxor.u32 %v720, 2147483648
        %v825 = vxor.u32 %v807, 2147483648
        %v826 = vxor.u32 %v809, 2147483648
        %v827 = vmul.f32 %v811, 1.442695
        %v828 = vpow.pop %v827
        %v829 = vmul.f32 %v812, 1.442695
        %v830 = vpow.pop %v829
        %v831 = vmul.f32 %v813, 1.442695
        %v832 = vpow.pop %v831
        %v833 = vmul.f32 %v814, 1.442695
        %v834 = vpow.pop %v833
        %v835 = vmul.f32 %v815, 1.442695
        %v836 = vpow.pop %v835
        %v837 = vmul.f32 %v816, 1.442695
        %v838 = vpow.pop %v837
        %v839 = vmul.f32 %v817, 1.442695
        %v840 = vpow.pop %v839
        %v841 = vmul.f32 %v818, 1.442695
        %v842 = vpow.pop %v841
        %v843 = vmul.f32 %v819, 1.442695
        %v844 = vpow.pop %v843
        %v845 = vmul.f32 %v820, 1.442695
        %v846 = vpow.pop %v845
        %v847 = vmul.f32 %v821, 1.442695
        %v848 = vpow.pop %v847
        %v849 = vmul.f32 %v822, 1.442695
        %v850 = vpow.pop %v849
        %v851 = vmul.f32 %v823, 1.442695
        %v852 = vpow.pop %v851
        %v853 = vmul.f32 %v824, 1.442695
        %v854 = vpow.pop %v853
        %v855 = vmul.f32 %v825, 1.442695
        %v856 = vpow.pop %v855
        %v857 = vmul.f32 %v826, 1.442695
        %v858 = vpow.pop %v857
        %v859 = vadd.f32 %v828, 1.0
        %v860 = vadd.f32 %v830, 1.0
        %v861 = vadd.f32 %v832, 1.0
        %v862 = vadd.f32 %v834, 1.0
        %v863 = vadd.f32 %v836, 1.0
        %v864 = vadd.f32 %v838, 1.0
        %v865 = vadd.f32 %v840, 1.0
        %v866 = vadd.f32 %v842, 1.0
        %v867 = vadd.f32 %v844, 1.0
        %v868 = vadd.f32 %v846, 1.0
        %v869 = vadd.f32 %v848, 1.0
        %v870 = vadd.f32 %v850, 1.0
        %v871 = vadd.f32 %v852, 1.0
        %v872 = vadd.f32 %v854, 1.0
        %v873 = vadd.f32 %v856, 1.0
        %v874 = vadd.f32 %v858, 1.0
        %v875 = vrcp.pop %v859
        %v876 = vmul.f32 1.0, %v875
        %v877 = vrcp.pop %v860
        %v878 = vmul.f32 1.0, %v877
        %v879 = vrcp.pop %v861
        %v880 = vmul.f32 1.0, %v879
        %v881 = vrcp.pop %v862
        %v882 = vmul.f32 1.0, %v881
        %v883 = vrcp.pop %v863
        %v884 = vmul.f32 1.0, %v883
        %v885 = vrcp.pop %v864
        %v886 = vmul.f32 1.0, %v885
        %v887 = vrcp.pop %v865
        %v888 = vmul.f32 1.0, %v887
        %v889 = vrcp.pop %v866
        %v890 = vmul.f32 1.0, %v889
        %v891 = vrcp.pop %v867
        %v892 = vmul.f32 1.0, %v891
        %v893 = vrcp.pop %v868
        %v894 = vmul.f32 1.0, %v893
        %v895 = vrcp.pop %v869
        %v896 = vmul.f32 1.0, %v895
        %v897 = vrcp.pop %v870
        %v898 = vmul.f32 1.0, %v897
        %v899 = vrcp.pop %v871
        %v900 = vmul.f32 1.0, %v899
        %v901 = vrcp.pop %v872
        %v902 = vmul.f32 1.0, %v901
        %v903 = vrcp.pop %v873
        %v904 = vmul.f32 1.0, %v903
        %v905 = vrcp.pop %v874
        %v906 = vmul.f32 1.0, %v905
        %v907 = vmul.f32 %v700, %v876
        %v908 = vmul.f32 %v702, %v878
        %v909 = vmul.f32 %v789, %v880
        %v910 = vmul.f32 %v791, %v882
        %v911 = vmul.f32 %v706, %v884
        %v912 = vmul.f32 %v708, %v886
        %v913 = vmul.f32 %v795, %v888
        %v914 = vmul.f32 %v797, %v890
        %v915 = vmul.f32 %v712, %v892
        %v916 = vmul.f32 %v714, %v894
        %v917 = vmul.f32 %v801, %v896
        %v918 = vmul.f32 %v803, %v898
        %v919 = vmul.f32 %v718, %v900
        %v920 = vmul.f32 %v720, %v902
        %v921 = vmul.f32 %v807, %v904
        %v922 = vmul.f32 %v809, %v906
        %v923 = vld [vmem:[%s3] sm:$0xff]
        %v924 = vld [vmem:[%s3 + $0x8] sm:$0xff]
        %v925 = vld [vmem:[%s3 + $0x10] sm:$0xff]
        %v926 = vld [vmem:[%s3 + $0x18] sm:$0xff]
        %v927 = vld [vmem:[%s4] sm:$0xff]
        %v928 = vld [vmem:[%s4 + $0x8] sm:$0xff]
        %v929 = vld [vmem:[%s4 + $0x10] sm:$0xff]
        %v930 = vld [vmem:[%s4 + $0x18] sm:$0xff]
        %932 = vset.pattern.permute.xlu0 0
        %933 = vperm.xlu0 %932, %v927
        %v934 = vpop.permute.xlu0 %933
        %937 = vset.pattern.permute.xlu0 0
        %938 = vperm.xlu0 %937, %v928
        %v939 = vpop.permute.xlu0 %938
        %942 = vset.pattern.permute.xlu0 0
        %943 = vperm.xlu0 %942, %v929
        %v944 = vpop.permute.xlu0 %943
        %947 = vset.pattern.permute.xlu0 0
        %948 = vperm.xlu0 %947, %v930
        %v949 = vpop.permute.xlu0 %948
        %vm951 = vcmask 261120
        %v953 = vsel %vm951, %v923, 0
        %v956 = vsel %vm951, %v924, 0
        %v959 = vsel %vm951, %v925, 0
        %v962 = vsel %vm951, %v926, 0
        %964 = vmatprep.subr.mxu0 %v908
        %965 = vmatpush1.msra.mxu0 %v907
        %966 = vmatprep.subr.mxu0 %v912
        %967 = vmatpush1.msra.mxu0 %v911
        %968 = vmatprep.subr.mxu0 %v916
        %969 = vmatpush1.msra.mxu0 %v915
        %970 = vmatprep.subr.mxu0 %v920
        %971 = vmatpush1.msra.mxu0 %v919
        %972 = vmatprep.subr.mxu0 0.0
        %973 = vmatpush1.msra.mxu0 0.0
        %974 = vmatprep.subr.mxu0 0.0
        %975 = vmatpush1.msra.mxu0 0.0
        %976 = vmatprep.subr.mxu0 0.0
        %977 = vmatpush1.msra.mxu0 0.0
        %978 = vmatprep.subr.mxu0 0.0
        %979 = vmatpush1.msra.mxu0 0.0
        %980 = vmatprep.subr.mxu0 0.0
        %981 = vmatpush1.msra.mxu0 0.0
        %982 = vmatprep.subr.mxu0 0.0
        %983 = vmatpush1.msra.mxu0 0.0
        %984 = vmatprep.subr.mxu0 0.0
        %985 = vmatpush1.msra.mxu0 0.0
        %986 = vmatprep.subr.mxu0 0.0
        %987 = vmatpush1.msra.mxu0 0.0
        %988 = vmatprep.subr.mxu0 0.0
        %989 = vmatpush1.msra.mxu0 0.0
        %990 = vmatprep.subr.mxu0 0.0
        %991 = vmatpush1.msra.mxu0 0.0
        %992 = vmatprep.subr.mxu0 0.0
        %993 = vmatpush1.msra.mxu0 0.0
        %994 = vmatprep.subr.mxu0 0.0
        %995 = vmatpush1.msra.mxu0 0.0
        %996 = vmatprep.subr.mxu0 0.0
        %997 = vmatpush1.msra.mxu0 0.0
        %998 = vmatprep.subr.mxu0 0.0
        %999 = vmatpush1.msra.mxu0 0.0
        %1000 = vmatprep.subr.mxu0 0.0
        %1001 = vmatpush1.msra.mxu0 0.0
        %1002 = vmatprep.subr.mxu0 0.0
        %1003 = vmatpush1.msra.mxu0 0.0
        %1004 = vmatprep.subr.mxu0 0.0
        %1005 = vmatpush1.msra.mxu0 0.0
        %1006 = vmatprep.subr.mxu0 0.0
        %1007 = vmatpush1.msra.mxu0 0.0
        %1008 = vmatprep.subr.mxu0 0.0
        %1009 = vmatpush1.msra.mxu0 0.0
        %1010 = vmatprep.subr.mxu0 0.0
        %1011 = vmatpush1.msra.mxu0 0.0
        %1012 = vmatprep.subr.mxu0 0.0
        %1013 = vmatpush1.msra.mxu0 0.0
        %1014 = vmatprep.subr.mxu0 0.0
        %1015 = vmatpush1.msra.mxu0 0.0
        %1016 = vmatprep.subr.mxu0 0.0
        %1017 = vmatpush1.msra.mxu0 0.0
        %1018 = vmatprep.subr.mxu0 0.0
        %1019 = vmatpush1.msra.mxu0 0.0
        %1020 = vmatprep.subr.mxu0 0.0
        %1021 = vmatpush1.msra.mxu0 0.0
        %1022 = vmatprep.subr.mxu0 0.0
        %1023 = vmatpush1.msra.mxu0 0.0
        %1024 = vmatprep.subr.mxu0 0.0
        %1025 = vmatpush1.msra.mxu0 0.0
        %1026 = vmatprep.subr.mxu0 0.0
        %1027 = vmatpush1.msra.mxu0 0.0
        %1028 = vmatprep.mubr.f32.mxu0 0.0
        %1029 = vmatmul.mubr.f32.gmra.mrb[0].mxu0 %v953
        %v1030 = vpop.f32.mrb[0].mxu0
        %v1031 = vadd.f32 %v934, %v1030
        %v1032 = vpop.f32.mrb[0].mxu0
        %v1033 = vadd.f32 %v934, %v1032
        %1034 = vmatprep.mubr.f32.mxu0 0.0
        %1035 = vmatmul.mubr.f32.gmra.mrb[0].mxu0 %v956
        %v1036 = vpop.f32.mrb[0].mxu0
        %v1037 = vadd.f32 %v939, %v1036
        %v1038 = vpop.f32.mrb[0].mxu0
        %v1039 = vadd.f32 %v939, %v1038
        %1040 = vmatprep.mubr.f32.mxu0 0.0
        %1041 = vmatmul.mubr.f32.gmra.mrb[0].mxu0 %v959
        %v1042 = vpop.f32.mrb[0].mxu0
        %v1043 = vadd.f32 %v944, %v1042
        %v1044 = vpop.f32.mrb[0].mxu0
        %v1045 = vadd.f32 %v944, %v1044
        %1046 = vmatprep.mubr.f32.mxu0 0.0
        %1047 = vmatmul.mubr.f32.gmra.mrb[0].mxu0 %v962
        %v1048 = vpop.f32.mrb[0].mxu0
        %v1049 = vadd.f32 %v949, %v1048
        %v1050 = vpop.f32.mrb[0].mxu0
        %v1051 = vadd.f32 %v949, %v1050
        %1052 = vdwg.mxu0
        %1053 = vmatprep.subr.mxu0 %v910
        %1054 = vmatpush1.msra.mxu0 %v909
        %1055 = vmatprep.subr.mxu0 %v914
        %1056 = vmatpush1.msra.mxu0 %v913
        %1057 = vmatprep.subr.mxu0 %v918
        %1058 = vmatpush1.msra.mxu0 %v917
        %1059 = vmatprep.subr.mxu0 %v922
        %1060 = vmatpush1.msra.mxu0 %v921
        %1061 = vmatprep.subr.mxu0 0.0
        %1062 = vmatpush1.msra.mxu0 0.0
        %1063 = vmatprep.subr.mxu0 0.0
        %1064 = vmatpush1.msra.mxu0 0.0
        %1065 = vmatprep.subr.mxu0 0.0
        %1066 = vmatpush1.msra.mxu0 0.0
        %1067 = vmatprep.subr.mxu0 0.0
        %1068 = vmatpush1.msra.mxu0 0.0
        %1069 = vmatprep.subr.mxu0 0.0
        %1070 = vmatpush1.msra.mxu0 0.0
        %1071 = vmatprep.subr.mxu0 0.0
        %1072 = vmatpush1.msra.mxu0 0.0
        %1073 = vmatprep.subr.mxu0 0.0
        %1074 = vmatpush1.msra.mxu0 0.0
        %1075 = vmatprep.subr.mxu0 0.0
        %1076 = vmatpush1.msra.mxu0 0.0
        %1077 = vmatprep.subr.mxu0 0.0
        %1078 = vmatpush1.msra.mxu0 0.0
        %1079 = vmatprep.subr.mxu0 0.0
        %1080 = vmatpush1.msra.mxu0 0.0
        %1081 = vmatprep.subr.mxu0 0.0
        %1082 = vmatpush1.msra.mxu0 0.0
        %1083 = vmatprep.subr.mxu0 0.0
        %1084 = vmatpush1.msra.mxu0 0.0
        %1085 = vmatprep.subr.mxu0 0.0
        %1086 = vmatpush1.msra.mxu0 0.0
        %1087 = vmatprep.subr.mxu0 0.0
        %1088 = vmatpush1.msra.mxu0 0.0
        %1089 = vmatprep.subr.mxu0 0.0
        %1090 = vmatpush1.msra.mxu0 0.0
        %1091 = vmatprep.subr.mxu0 0.0
        %1092 = vmatpush1.msra.mxu0 0.0
        %1093 = vmatprep.subr.mxu0 0.0
        %1094 = vmatpush1.msra.mxu0 0.0
        %1095 = vmatprep.subr.mxu0 0.0
        %1096 = vmatpush1.msra.mxu0 0.0
        %1097 = vmatprep.subr.mxu0 0.0
        %1098 = vmatpush1.msra.mxu0 0.0
        %1099 = vmatprep.subr.mxu0 0.0
        %1100 = vmatpush1.msra.mxu0 0.0
        %1101 = vmatprep.subr.mxu0 0.0
        %1102 = vmatpush1.msra.mxu0 0.0
        %1103 = vmatprep.subr.mxu0 0.0
        %1104 = vmatpush1.msra.mxu0 0.0
        %1105 = vmatprep.subr.mxu0 0.0
        %1106 = vmatpush1.msra.mxu0 0.0
        %1107 = vmatprep.subr.mxu0 0.0
        %1108 = vmatpush1.msra.mxu0 0.0
        %1109 = vmatprep.subr.mxu0 0.0
        %1110 = vmatpush1.msra.mxu0 0.0
        %1111 = vmatprep.subr.mxu0 0.0
        %1112 = vmatpush1.msra.mxu0 0.0
        %1113 = vmatprep.subr.mxu0 0.0
        %1114 = vmatpush1.msra.mxu0 0.0
        %1115 = vmatprep.subr.mxu0 0.0
        %1116 = vmatpush1.msra.mxu0 0.0
        %1117 = vmatprep.mubr.f32.mxu0 0.0
        %1118 = vmatmul.mubr.f32.gmra.mrb[0].mxu0 %v953
        %v1119 = vpop.f32.mrb[0].mxu0
        %v1120 = vadd.f32 %v934, %v1119
        %v1121 = vpop.f32.mrb[0].mxu0
        %v1122 = vadd.f32 %v934, %v1121
        %1123 = vmatprep.mubr.f32.mxu0 0.0
        %1124 = vmatmul.mubr.f32.gmra.mrb[0].mxu0 %v956
        %v1125 = vpop.f32.mrb[0].mxu0
        %v1126 = vadd.f32 %v939, %v1125
        %v1127 = vpop.f32.mrb[0].mxu0
        %v1128 = vadd.f32 %v939, %v1127
        %1129 = vmatprep.mubr.f32.mxu0 0.0
        %1130 = vmatmul.mubr.f32.gmra.mrb[0].mxu0 %v959
        %v1131 = vpop.f32.mrb[0].mxu0
        %v1132 = vadd.f32 %v944, %v1131
        %v1133 = vpop.f32.mrb[0].mxu0
        %v1134 = vadd.f32 %v944, %v1133
        %1135 = vmatprep.mubr.f32.mxu0 0.0
        %1136 = vmatmul.mubr.f32.gmra.mrb[0].mxu0 %v962
        %v1137 = vpop.f32.mrb[0].mxu0
        %v1138 = vadd.f32 %v949, %v1137
        %v1139 = vpop.f32.mrb[0].mxu0
        %v1140 = vadd.f32 %v949, %v1139
        %1141 = vdwg.mxu0
        %v1142 = vxor.u32 %v1031, 2147483648
        %v1143 = vxor.u32 %v1033, 2147483648
        %v1144 = vxor.u32 %v1120, 2147483648
        %v1145 = vxor.u32 %v1122, 2147483648
        %v1146 = vxor.u32 %v1037, 2147483648
        %v1147 = vxor.u32 %v1039, 2147483648
        %v1148 = vxor.u32 %v1126, 2147483648
        %v1149 = vxor.u32 %v1128, 2147483648
        %v1150 = vxor.u32 %v1043, 2147483648
        %v1151 = vxor.u32 %v1045, 2147483648
        %v1152 = vxor.u32 %v1132, 2147483648
        %v1153 = vxor.u32 %v1134, 2147483648
        %v1154 = vxor.u32 %v1049, 2147483648
        %v1155 = vxor.u32 %v1051, 2147483648
        %v1156 = vxor.u32 %v1138, 2147483648
        %v1157 = vxor.u32 %v1140, 2147483648
        %v1158 = vmul.f32 %v1142, 1.442695
        %v1159 = vpow.pop %v1158
        %v1160 = vmul.f32 %v1143, 1.442695
        %v1161 = vpow.pop %v1160
        %v1162 = vmul.f32 %v1144, 1.442695
        %v1163 = vpow.pop %v1162
        %v1164 = vmul.f32 %v1145, 1.442695
        %v1165 = vpow.pop %v1164
        %v1166 = vmul.f32 %v1146, 1.442695
        %v1167 = vpow.pop %v1166
        %v1168 = vmul.f32 %v1147, 1.442695
        %v1169 = vpow.pop %v1168
        %v1170 = vmul.f32 %v1148, 1.442695
        %v1171 = vpow.pop %v1170
        %v1172 = vmul.f32 %v1149, 1.442695
        %v1173 = vpow.pop %v1172
        %v1174 = vmul.f32 %v1150, 1.442695
        %v1175 = vpow.pop %v1174
        %v1176 = vmul.f32 %v1151, 1.442695
        %v1177 = vpow.pop %v1176
        %v1178 = vmul.f32 %v1152, 1.442695
        %v1179 = vpow.pop %v1178
        %v1180 = vmul.f32 %v1153, 1.442695
        %v1181 = vpow.pop %v1180
        %v1182 = vmul.f32 %v1154, 1.442695
        %v1183 = vpow.pop %v1182
        %v1184 = vmul.f32 %v1155, 1.442695
        %v1185 = vpow.pop %v1184
        %v1186 = vmul.f32 %v1156, 1.442695
        %v1187 = vpow.pop %v1186
        %v1188 = vmul.f32 %v1157, 1.442695
        %v1189 = vpow.pop %v1188
        %v1190 = vadd.f32 %v1159, 1.0
        %v1191 = vadd.f32 %v1161, 1.0
        %v1192 = vadd.f32 %v1163, 1.0
        %v1193 = vadd.f32 %v1165, 1.0
        %v1194 = vadd.f32 %v1167, 1.0
        %v1195 = vadd.f32 %v1169, 1.0
        %v1196 = vadd.f32 %v1171, 1.0
        %v1197 = vadd.f32 %v1173, 1.0
        %v1198 = vadd.f32 %v1175, 1.0
        %v1199 = vadd.f32 %v1177, 1.0
        %v1200 = vadd.f32 %v1179, 1.0
        %v1201 = vadd.f32 %v1181, 1.0
        %v1202 = vadd.f32 %v1183, 1.0
        %v1203 = vadd.f32 %v1185, 1.0
        %v1204 = vadd.f32 %v1187, 1.0
        %v1205 = vadd.f32 %v1189, 1.0
        %v1206 = vrcp.pop %v1190
        %v1207 = vmul.f32 1.0, %v1206
        %v1208 = vrcp.pop %v1191
        %v1209 = vmul.f32 1.0, %v1208
        %v1210 = vrcp.pop %v1192
        %v1211 = vmul.f32 1.0, %v1210
        %v1212 = vrcp.pop %v1193
        %v1213 = vmul.f32 1.0, %v1212
        %v1214 = vrcp.pop %v1194
        %v1215 = vmul.f32 1.0, %v1214
        %v1216 = vrcp.pop %v1195
        %v1217 = vmul.f32 1.0, %v1216
        %v1218 = vrcp.pop %v1196
        %v1219 = vmul.f32 1.0, %v1218
        %v1220 = vrcp.pop %v1197
        %v1221 = vmul.f32 1.0, %v1220
        %v1222 = vrcp.pop %v1198
        %v1223 = vmul.f32 1.0, %v1222
        %v1224 = vrcp.pop %v1199
        %v1225 = vmul.f32 1.0, %v1224
        %v1226 = vrcp.pop %v1200
        %v1227 = vmul.f32 1.0, %v1226
        %v1228 = vrcp.pop %v1201
        %v1229 = vmul.f32 1.0, %v1228
        %v1230 = vrcp.pop %v1202
        %v1231 = vmul.f32 1.0, %v1230
        %v1232 = vrcp.pop %v1203
        %v1233 = vmul.f32 1.0, %v1232
        %v1234 = vrcp.pop %v1204
        %v1235 = vmul.f32 1.0, %v1234
        %v1236 = vrcp.pop %v1205
        %v1237 = vmul.f32 1.0, %v1236
        %v1238 = vmul.f32 %v1031, %v1207
        %v1239 = vmul.f32 %v1033, %v1209
        %v1240 = vmul.f32 %v1120, %v1211
        %v1241 = vmul.f32 %v1122, %v1213
        %v1242 = vmul.f32 %v1037, %v1215
        %v1243 = vmul.f32 %v1039, %v1217
        %v1244 = vmul.f32 %v1126, %v1219
        %v1245 = vmul.f32 %v1128, %v1221
        %v1246 = vmul.f32 %v1043, %v1223
        %v1247 = vmul.f32 %v1045, %v1225
        %v1248 = vmul.f32 %v1132, %v1227
        %v1249 = vmul.f32 %v1134, %v1229
        %v1250 = vmul.f32 %v1049, %v1231
        %v1251 = vmul.f32 %v1051, %v1233
        %v1252 = vmul.f32 %v1138, %v1235
        %v1253 = vmul.f32 %v1140, %v1237
        %v1254 = vld [vmem:[%s5] sm:$0xff]
        %v1255 = vld [vmem:[%s5 + $0x8] sm:$0xff]
        %v1256 = vld [vmem:[%s5 + $0x10] sm:$0xff]
        %v1257 = vld [vmem:[%s5 + $0x18] sm:$0xff]
        %v1258 = vld [vmem:[%s6] sm:$0xff]
        %v1259 = vld [vmem:[%s6 + $0x8] sm:$0xff]
        %v1260 = vld [vmem:[%s6 + $0x10] sm:$0xff]
        %v1261 = vld [vmem:[%s6 + $0x18] sm:$0xff]
        %1263 = vset.pattern.permute.xlu0 0
        %1264 = vperm.xlu0 %1263, %v1258
        %v1265 = vpop.permute.xlu0 %1264
        %1268 = vset.pattern.permute.xlu0 0
        %1269 = vperm.xlu0 %1268, %v1259
        %v1270 = vpop.permute.xlu0 %1269
        %1273 = vset.pattern.permute.xlu0 0
        %1274 = vperm.xlu0 %1273, %v1260
        %v1275 = vpop.permute.xlu0 %1274
        %1278 = vset.pattern.permute.xlu0 0
        %1279 = vperm.xlu0 %1278, %v1261
        %v1280 = vpop.permute.xlu0 %1279
        %v1283 = vsel %vm951, %v1254, 0
        %v1286 = vsel %vm951, %v1255, 0
        %v1289 = vsel %vm951, %v1256, 0
        %v1292 = vsel %vm951, %v1257, 0
        %1294 = vmatprep.subr.mxu0 %v1239
        %1295 = vmatpush1.msra.mxu0 %v1238
        %1296 = vmatprep.subr.mxu0 %v1243
        %1297 = vmatpush1.msra.mxu0 %v1242
        %1298 = vmatprep.subr.mxu0 %v1247
        %1299 = vmatpush1.msra.mxu0 %v1246
        %1300 = vmatprep.subr.mxu0 %v1251
        %1301 = vmatpush1.msra.mxu0 %v1250
        %1302 = vmatprep.subr.mxu0 0.0
        %1303 = vmatpush1.msra.mxu0 0.0
        %1304 = vmatprep.subr.mxu0 0.0
        %1305 = vmatpush1.msra.mxu0 0.0
        %1306 = vmatprep.subr.mxu0 0.0
        %1307 = vmatpush1.msra.mxu0 0.0
        %1308 = vmatprep.subr.mxu0 0.0
        %1309 = vmatpush1.msra.mxu0 0.0
        %1310 = vmatprep.subr.mxu0 0.0
        %1311 = vmatpush1.msra.mxu0 0.0
        %1312 = vmatprep.subr.mxu0 0.0
        %1313 = vmatpush1.msra.mxu0 0.0
        %1314 = vmatprep.subr.mxu0 0.0
        %1315 = vmatpush1.msra.mxu0 0.0
        %1316 = vmatprep.subr.mxu0 0.0
        %1317 = vmatpush1.msra.mxu0 0.0
        %1318 = vmatprep.subr.mxu0 0.0
        %1319 = vmatpush1.msra.mxu0 0.0
        %1320 = vmatprep.subr.mxu0 0.0
        %1321 = vmatpush1.msra.mxu0 0.0
        %1322 = vmatprep.subr.mxu0 0.0
        %1323 = vmatpush1.msra.mxu0 0.0
        %1324 = vmatprep.subr.mxu0 0.0
        %1325 = vmatpush1.msra.mxu0 0.0
        %1326 = vmatprep.subr.mxu0 0.0
        %1327 = vmatpush1.msra.mxu0 0.0
        %1328 = vmatprep.subr.mxu0 0.0
        %1329 = vmatpush1.msra.mxu0 0.0
        %1330 = vmatprep.subr.mxu0 0.0
        %1331 = vmatpush1.msra.mxu0 0.0
        %1332 = vmatprep.subr.mxu0 0.0
        %1333 = vmatpush1.msra.mxu0 0.0
        %1334 = vmatprep.subr.mxu0 0.0
        %1335 = vmatpush1.msra.mxu0 0.0
        %1336 = vmatprep.subr.mxu0 0.0
        %1337 = vmatpush1.msra.mxu0 0.0
        %1338 = vmatprep.subr.mxu0 0.0
        %1339 = vmatpush1.msra.mxu0 0.0
        %1340 = vmatprep.subr.mxu0 0.0
        %1341 = vmatpush1.msra.mxu0 0.0
        %1342 = vmatprep.subr.mxu0 0.0
        %1343 = vmatpush1.msra.mxu0 0.0
        %1344 = vmatprep.subr.mxu0 0.0
        %1345 = vmatpush1.msra.mxu0 0.0
        %1346 = vmatprep.subr.mxu0 0.0
        %1347 = vmatpush1.msra.mxu0 0.0
        %1348 = vmatprep.subr.mxu0 0.0
        %1349 = vmatpush1.msra.mxu0 0.0
        %1350 = vmatprep.subr.mxu0 0.0
        %1351 = vmatpush1.msra.mxu0 0.0
        %1352 = vmatprep.subr.mxu0 0.0
        %1353 = vmatpush1.msra.mxu0 0.0
        %1354 = vmatprep.subr.mxu0 0.0
        %1355 = vmatpush1.msra.mxu0 0.0
        %1356 = vmatprep.subr.mxu0 0.0
        %1357 = vmatpush1.msra.mxu0 0.0
        %1358 = vmatprep.mubr.f32.mxu0 0.0
        %1359 = vmatmul.mubr.f32.gmra.mrb[0].mxu0 %v1283
        %v1360 = vpop.f32.mrb[0].mxu0
        %v1361 = vadd.f32 %v1265, %v1360
        %v1362 = vpop.f32.mrb[0].mxu0
        %v1363 = vadd.f32 %v1265, %v1362
        %1364 = vmatprep.mubr.f32.mxu0 0.0
        %1365 = vmatmul.mubr.f32.gmra.mrb[0].mxu0 %v1286
        %v1366 = vpop.f32.mrb[0].mxu0
        %v1367 = vadd.f32 %v1270, %v1366
        %v1368 = vpop.f32.mrb[0].mxu0
        %v1369 = vadd.f32 %v1270, %v1368
        %1370 = vmatprep.mubr.f32.mxu0 0.0
        %1371 = vmatmul.mubr.f32.gmra.mrb[0].mxu0 %v1289
        %v1372 = vpop.f32.mrb[0].mxu0
        %v1373 = vadd.f32 %v1275, %v1372
        %v1374 = vpop.f32.mrb[0].mxu0
        %v1375 = vadd.f32 %v1275, %v1374
        %1376 = vmatprep.mubr.f32.mxu0 0.0
        %1377 = vmatmul.mubr.f32.gmra.mrb[0].mxu0 %v1292
        %v1378 = vpop.f32.mrb[0].mxu0
        %v1379 = vadd.f32 %v1280, %v1378
        %v1380 = vpop.f32.mrb[0].mxu0
        %v1381 = vadd.f32 %v1280, %v1380
        %1382 = vdwg.mxu0
        %1383 = vmatprep.subr.mxu0 %v1241
        %1384 = vmatpush1.msra.mxu0 %v1240
        %1385 = vmatprep.subr.mxu0 %v1245
        %1386 = vmatpush1.msra.mxu0 %v1244
        %1387 = vmatprep.subr.mxu0 %v1249
        %1388 = vmatpush1.msra.mxu0 %v1248
        %1389 = vmatprep.subr.mxu0 %v1253
        %1390 = vmatpush1.msra.mxu0 %v1252
        %1391 = vmatprep.subr.mxu0 0.0
        %1392 = vmatpush1.msra.mxu0 0.0
        %1393 = vmatprep.subr.mxu0 0.0
        %1394 = vmatpush1.msra.mxu0 0.0
        %1395 = vmatprep.subr.mxu0 0.0
        %1396 = vmatpush1.msra.mxu0 0.0
        %1397 = vmatprep.subr.mxu0 0.0
        %1398 = vmatpush1.msra.mxu0 0.0
        %1399 = vmatprep.subr.mxu0 0.0
        %1400 = vmatpush1.msra.mxu0 0.0
        %1401 = vmatprep.subr.mxu0 0.0
        %1402 = vmatpush1.msra.mxu0 0.0
        %1403 = vmatprep.subr.mxu0 0.0
        %1404 = vmatpush1.msra.mxu0 0.0
        %1405 = vmatprep.subr.mxu0 0.0
        %1406 = vmatpush1.msra.mxu0 0.0
        %1407 = vmatprep.subr.mxu0 0.0
        %1408 = vmatpush1.msra.mxu0 0.0
        %1409 = vmatprep.subr.mxu0 0.0
        %1410 = vmatpush1.msra.mxu0 0.0
        %1411 = vmatprep.subr.mxu0 0.0
        %1412 = vmatpush1.msra.mxu0 0.0
        %1413 = vmatprep.subr.mxu0 0.0
        %1414 = vmatpush1.msra.mxu0 0.0
        %1415 = vmatprep.subr.mxu0 0.0
        %1416 = vmatpush1.msra.mxu0 0.0
        %1417 = vmatprep.subr.mxu0 0.0
        %1418 = vmatpush1.msra.mxu0 0.0
        %1419 = vmatprep.subr.mxu0 0.0
        %1420 = vmatpush1.msra.mxu0 0.0
        %1421 = vmatprep.subr.mxu0 0.0
        %1422 = vmatpush1.msra.mxu0 0.0
        %1423 = vmatprep.subr.mxu0 0.0
        %1424 = vmatpush1.msra.mxu0 0.0
        %1425 = vmatprep.subr.mxu0 0.0
        %1426 = vmatpush1.msra.mxu0 0.0
        %1427 = vmatprep.subr.mxu0 0.0
        %1428 = vmatpush1.msra.mxu0 0.0
        %1429 = vmatprep.subr.mxu0 0.0
        %1430 = vmatpush1.msra.mxu0 0.0
        %1431 = vmatprep.subr.mxu0 0.0
        %1432 = vmatpush1.msra.mxu0 0.0
        %1433 = vmatprep.subr.mxu0 0.0
        %1434 = vmatpush1.msra.mxu0 0.0
        %1435 = vmatprep.subr.mxu0 0.0
        %1436 = vmatpush1.msra.mxu0 0.0
        %1437 = vmatprep.subr.mxu0 0.0
        %1438 = vmatpush1.msra.mxu0 0.0
        %1439 = vmatprep.subr.mxu0 0.0
        %1440 = vmatpush1.msra.mxu0 0.0
        %1441 = vmatprep.subr.mxu0 0.0
        %1442 = vmatpush1.msra.mxu0 0.0
        %1443 = vmatprep.subr.mxu0 0.0
        %1444 = vmatpush1.msra.mxu0 0.0
        %1445 = vmatprep.subr.mxu0 0.0
        %1446 = vmatpush1.msra.mxu0 0.0
        %1447 = vmatprep.mubr.f32.mxu0 0.0
        %1448 = vmatmul.mubr.f32.gmra.mrb[0].mxu0 %v1283
        %v1449 = vpop.f32.mrb[0].mxu0
        %v1450 = vadd.f32 %v1265, %v1449
        %v1451 = vpop.f32.mrb[0].mxu0
        %v1452 = vadd.f32 %v1265, %v1451
        %1453 = vmatprep.mubr.f32.mxu0 0.0
        %1454 = vmatmul.mubr.f32.gmra.mrb[0].mxu0 %v1286
        %v1455 = vpop.f32.mrb[0].mxu0
        %v1456 = vadd.f32 %v1270, %v1455
        %v1457 = vpop.f32.mrb[0].mxu0
        %v1458 = vadd.f32 %v1270, %v1457
        %1459 = vmatprep.mubr.f32.mxu0 0.0
        %1460 = vmatmul.mubr.f32.gmra.mrb[0].mxu0 %v1289
        %v1461 = vpop.f32.mrb[0].mxu0
        %v1462 = vadd.f32 %v1275, %v1461
        %v1463 = vpop.f32.mrb[0].mxu0
        %v1464 = vadd.f32 %v1275, %v1463
        %1465 = vmatprep.mubr.f32.mxu0 0.0
        %1466 = vmatmul.mubr.f32.gmra.mrb[0].mxu0 %v1292
        %v1467 = vpop.f32.mrb[0].mxu0
        %v1468 = vadd.f32 %v1280, %v1467
        %v1469 = vpop.f32.mrb[0].mxu0
        %v1470 = vadd.f32 %v1280, %v1469
        %1471 = vdwg.mxu0
        %v1472 = vxor.u32 %v1361, 2147483648
        %v1473 = vxor.u32 %v1363, 2147483648
        %v1474 = vxor.u32 %v1450, 2147483648
        %v1475 = vxor.u32 %v1452, 2147483648
        %v1476 = vxor.u32 %v1367, 2147483648
        %v1477 = vxor.u32 %v1369, 2147483648
        %v1478 = vxor.u32 %v1456, 2147483648
        %v1479 = vxor.u32 %v1458, 2147483648
        %v1480 = vxor.u32 %v1373, 2147483648
        %v1481 = vxor.u32 %v1375, 2147483648
        %v1482 = vxor.u32 %v1462, 2147483648
        %v1483 = vxor.u32 %v1464, 2147483648
        %v1484 = vxor.u32 %v1379, 2147483648
        %v1485 = vxor.u32 %v1381, 2147483648
        %v1486 = vxor.u32 %v1468, 2147483648
        %v1487 = vxor.u32 %v1470, 2147483648
        %v1488 = vmul.f32 %v1472, 1.442695
        %v1489 = vpow.pop %v1488
        %v1490 = vmul.f32 %v1473, 1.442695
        %v1491 = vpow.pop %v1490
        %v1492 = vmul.f32 %v1474, 1.442695
        %v1493 = vpow.pop %v1492
        %v1494 = vmul.f32 %v1475, 1.442695
        %v1495 = vpow.pop %v1494
        %v1496 = vmul.f32 %v1476, 1.442695
        %v1497 = vpow.pop %v1496
        %v1498 = vmul.f32 %v1477, 1.442695
        %v1499 = vpow.pop %v1498
        %v1500 = vmul.f32 %v1478, 1.442695
        %v1501 = vpow.pop %v1500
        %v1502 = vmul.f32 %v1479, 1.442695
        %v1503 = vpow.pop %v1502
        %v1504 = vmul.f32 %v1480, 1.442695
        %v1505 = vpow.pop %v1504
        %v1506 = vmul.f32 %v1481, 1.442695
        %v1507 = vpow.pop %v1506
        %v1508 = vmul.f32 %v1482, 1.442695
        %v1509 = vpow.pop %v1508
        %v1510 = vmul.f32 %v1483, 1.442695
        %v1511 = vpow.pop %v1510
        %v1512 = vmul.f32 %v1484, 1.442695
        %v1513 = vpow.pop %v1512
        %v1514 = vmul.f32 %v1485, 1.442695
        %v1515 = vpow.pop %v1514
        %v1516 = vmul.f32 %v1486, 1.442695
        %v1517 = vpow.pop %v1516
        %v1518 = vmul.f32 %v1487, 1.442695
        %v1519 = vpow.pop %v1518
        %v1520 = vadd.f32 %v1489, 1.0
        %v1521 = vadd.f32 %v1491, 1.0
        %v1522 = vadd.f32 %v1493, 1.0
        %v1523 = vadd.f32 %v1495, 1.0
        %v1524 = vadd.f32 %v1497, 1.0
        %v1525 = vadd.f32 %v1499, 1.0
        %v1526 = vadd.f32 %v1501, 1.0
        %v1527 = vadd.f32 %v1503, 1.0
        %v1528 = vadd.f32 %v1505, 1.0
        %v1529 = vadd.f32 %v1507, 1.0
        %v1530 = vadd.f32 %v1509, 1.0
        %v1531 = vadd.f32 %v1511, 1.0
        %v1532 = vadd.f32 %v1513, 1.0
        %v1533 = vadd.f32 %v1515, 1.0
        %v1534 = vadd.f32 %v1517, 1.0
        %v1535 = vadd.f32 %v1519, 1.0
        %v1536 = vrcp.pop %v1520
        %v1537 = vmul.f32 1.0, %v1536
        %v1538 = vrcp.pop %v1521
        %v1539 = vmul.f32 1.0, %v1538
        %v1540 = vrcp.pop %v1522
        %v1541 = vmul.f32 1.0, %v1540
        %v1542 = vrcp.pop %v1523
        %v1543 = vmul.f32 1.0, %v1542
        %v1544 = vrcp.pop %v1524
        %v1545 = vmul.f32 1.0, %v1544
        %v1546 = vrcp.pop %v1525
        %v1547 = vmul.f32 1.0, %v1546
        %v1548 = vrcp.pop %v1526
        %v1549 = vmul.f32 1.0, %v1548
        %v1550 = vrcp.pop %v1527
        %v1551 = vmul.f32 1.0, %v1550
        %v1552 = vrcp.pop %v1528
        %v1553 = vmul.f32 1.0, %v1552
        %v1554 = vrcp.pop %v1529
        %v1555 = vmul.f32 1.0, %v1554
        %v1556 = vrcp.pop %v1530
        %v1557 = vmul.f32 1.0, %v1556
        %v1558 = vrcp.pop %v1531
        %v1559 = vmul.f32 1.0, %v1558
        %v1560 = vrcp.pop %v1532
        %v1561 = vmul.f32 1.0, %v1560
        %v1562 = vrcp.pop %v1533
        %v1563 = vmul.f32 1.0, %v1562
        %v1564 = vrcp.pop %v1534
        %v1565 = vmul.f32 1.0, %v1564
        %v1566 = vrcp.pop %v1535
        %v1567 = vmul.f32 1.0, %v1566
        %v1568 = vmul.f32 %v1361, %v1537
        %v1569 = vmul.f32 %v1363, %v1539
        %v1570 = vmul.f32 %v1450, %v1541
        %v1571 = vmul.f32 %v1452, %v1543
        %v1572 = vmul.f32 %v1367, %v1545
        %v1573 = vmul.f32 %v1369, %v1547
        %v1574 = vmul.f32 %v1456, %v1549
        %v1575 = vmul.f32 %v1458, %v1551
        %v1576 = vmul.f32 %v1373, %v1553
        %v1577 = vmul.f32 %v1375, %v1555
        %v1578 = vmul.f32 %v1462, %v1557
        %v1579 = vmul.f32 %v1464, %v1559
        %v1580 = vmul.f32 %v1379, %v1561
        %v1581 = vmul.f32 %v1381, %v1563
        %v1582 = vmul.f32 %v1468, %v1565
        %v1583 = vmul.f32 %v1470, %v1567
        %v1584 = vld [vmem:[%s7] sm:$0x1]
        %v1585 = vld [vmem:[#allocation2] sm:$0x1]
        %1587 = vset.pattern.permute.xlu0 0
        %1588 = vperm.xlu0 %1587, %v1585
        %v1589 = vpop.permute.xlu0 %1588
        %v1591 = vlaneseq
        %v1592 = vshrl.u32 %v1591, 7
        %v1593 = vsub.s32 0, %v1592
        %v1594 = vrot.slane %v1589, %v1593
        %v1596 = vsel %vm951, %v1584, 0
        %1598 = vmatprep.subr.mxu0 %v1569
        %1599 = vmatpush1.msra.mxu0 %v1568
        %1600 = vmatprep.subr.mxu0 %v1573
        %1601 = vmatpush1.msra.mxu0 %v1572
        %1602 = vmatprep.subr.mxu0 %v1577
        %1603 = vmatpush1.msra.mxu0 %v1576
        %1604 = vmatprep.subr.mxu0 %v1581
        %1605 = vmatpush1.msra.mxu0 %v1580
        %1606 = vmatprep.subr.mxu0 0.0
        %1607 = vmatpush1.msra.mxu0 0.0
        %1608 = vmatprep.subr.mxu0 0.0
        %1609 = vmatpush1.msra.mxu0 0.0
        %1610 = vmatprep.subr.mxu0 0.0
        %1611 = vmatpush1.msra.mxu0 0.0
        %1612 = vmatprep.subr.mxu0 0.0
        %1613 = vmatpush1.msra.mxu0 0.0
        %1614 = vmatprep.subr.mxu0 0.0
        %1615 = vmatpush1.msra.mxu0 0.0
        %1616 = vmatprep.subr.mxu0 0.0
        %1617 = vmatpush1.msra.mxu0 0.0
        %1618 = vmatprep.subr.mxu0 0.0
        %1619 = vmatpush1.msra.mxu0 0.0
        %1620 = vmatprep.subr.mxu0 0.0
        %1621 = vmatpush1.msra.mxu0 0.0
        %1622 = vmatprep.subr.mxu0 0.0
        %1623 = vmatpush1.msra.mxu0 0.0
        %1624 = vmatprep.subr.mxu0 0.0
        %1625 = vmatpush1.msra.mxu0 0.0
        %1626 = vmatprep.subr.mxu0 0.0
        %1627 = vmatpush1.msra.mxu0 0.0
        %1628 = vmatprep.subr.mxu0 0.0
        %1629 = vmatpush1.msra.mxu0 0.0
        %1630 = vmatprep.subr.mxu0 0.0
        %1631 = vmatpush1.msra.mxu0 0.0
        %1632 = vmatprep.subr.mxu0 0.0
        %1633 = vmatpush1.msra.mxu0 0.0
        %1634 = vmatprep.subr.mxu0 0.0
        %1635 = vmatpush1.msra.mxu0 0.0
        %1636 = vmatprep.subr.mxu0 0.0
        %1637 = vmatpush1.msra.mxu0 0.0
        %1638 = vmatprep.subr.mxu0 0.0
        %1639 = vmatpush1.msra.mxu0 0.0
        %1640 = vmatprep.subr.mxu0 0.0
        %1641 = vmatpush1.msra.mxu0 0.0
        %1642 = vmatprep.subr.mxu0 0.0
        %1643 = vmatpush1.msra.mxu0 0.0
        %1644 = vmatprep.subr.mxu0 0.0
        %1645 = vmatpush1.msra.mxu0 0.0
        %1646 = vmatprep.subr.mxu0 0.0
        %1647 = vmatpush1.msra.mxu0 0.0
        %1648 = vmatprep.subr.mxu0 0.0
        %1649 = vmatpush1.msra.mxu0 0.0
        %1650 = vmatprep.subr.mxu0 0.0
        %1651 = vmatpush1.msra.mxu0 0.0
        %1652 = vmatprep.subr.mxu0 0.0
        %1653 = vmatpush1.msra.mxu0 0.0
        %1654 = vmatprep.subr.mxu0 0.0
        %1655 = vmatpush1.msra.mxu0 0.0
        %1656 = vmatprep.subr.mxu0 0.0
        %1657 = vmatpush1.msra.mxu0 0.0
        %1658 = vmatprep.subr.mxu0 0.0
        %1659 = vmatpush1.msra.mxu0 0.0
        %1660 = vmatprep.subr.mxu0 0.0
        %1661 = vmatpush1.msra.mxu0 0.0
        %1662 = vmatprep.mubr.f32.mxu0 0.0
        %1663 = vmatmul.mubr.f32.gmra.mrb[0].mxu0 %v1596
        %v1664 = vpop.f32.mrb[0].mxu0
        %v1665 = vadd.f32 %v1594, %v1664
        %v1666 = vpop.f32.mrb[0].mxu0
        %v1667 = vadd.f32 %v1594, %v1666
        %1668 = vdwg.mxu0
        %1669 = vmatprep.subr.mxu0 %v1571
        %1670 = vmatpush1.msra.mxu0 %v1570
        %1671 = vmatprep.subr.mxu0 %v1575
        %1672 = vmatpush1.msra.mxu0 %v1574
        %1673 = vmatprep.subr.mxu0 %v1579
        %1674 = vmatpush1.msra.mxu0 %v1578
        %1675 = vmatprep.subr.mxu0 %v1583
        %1676 = vmatpush1.msra.mxu0 %v1582
        %1677 = vmatprep.subr.mxu0 0.0
        %1678 = vmatpush1.msra.mxu0 0.0
        %1679 = vmatprep.subr.mxu0 0.0
        %1680 = vmatpush1.msra.mxu0 0.0
        %1681 = vmatprep.subr.mxu0 0.0
        %1682 = vmatpush1.msra.mxu0 0.0
        %1683 = vmatprep.subr.mxu0 0.0
        %1684 = vmatpush1.msra.mxu0 0.0
        %1685 = vmatprep.subr.mxu0 0.0
        %1686 = vmatpush1.msra.mxu0 0.0
        %1687 = vmatprep.subr.mxu0 0.0
        %1688 = vmatpush1.msra.mxu0 0.0
        %1689 = vmatprep.subr.mxu0 0.0
        %1690 = vmatpush1.msra.mxu0 0.0
        %1691 = vmatprep.subr.mxu0 0.0
        %1692 = vmatpush1.msra.mxu0 0.0
        %1693 = vmatprep.subr.mxu0 0.0
        %1694 = vmatpush1.msra.mxu0 0.0
        %1695 = vmatprep.subr.mxu0 0.0
        %1696 = vmatpush1.msra.mxu0 0.0
        %1697 = vmatprep.subr.mxu0 0.0
        %1698 = vmatpush1.msra.mxu0 0.0
        %1699 = vmatprep.subr.mxu0 0.0
        %1700 = vmatpush1.msra.mxu0 0.0
        %1701 = vmatprep.subr.mxu0 0.0
        %1702 = vmatpush1.msra.mxu0 0.0
        %1703 = vmatprep.subr.mxu0 0.0
        %1704 = vmatpush1.msra.mxu0 0.0
        %1705 = vmatprep.subr.mxu0 0.0
        %1706 = vmatpush1.msra.mxu0 0.0
        %1707 = vmatprep.subr.mxu0 0.0
        %1708 = vmatpush1.msra.mxu0 0.0
        %1709 = vmatprep.subr.mxu0 0.0
        %1710 = vmatpush1.msra.mxu0 0.0
        %1711 = vmatprep.subr.mxu0 0.0
        %1712 = vmatpush1.msra.mxu0 0.0
        %1713 = vmatprep.subr.mxu0 0.0
        %1714 = vmatpush1.msra.mxu0 0.0
        %1715 = vmatprep.subr.mxu0 0.0
        %1716 = vmatpush1.msra.mxu0 0.0
        %1717 = vmatprep.subr.mxu0 0.0
        %1718 = vmatpush1.msra.mxu0 0.0
        %1719 = vmatprep.subr.mxu0 0.0
        %1720 = vmatpush1.msra.mxu0 0.0
        %1721 = vmatprep.subr.mxu0 0.0
        %1722 = vmatpush1.msra.mxu0 0.0
        %1723 = vmatprep.subr.mxu0 0.0
        %1724 = vmatpush1.msra.mxu0 0.0
        %1725 = vmatprep.subr.mxu0 0.0
        %1726 = vmatpush1.msra.mxu0 0.0
        %1727 = vmatprep.subr.mxu0 0.0
        %1728 = vmatpush1.msra.mxu0 0.0
        %1729 = vmatprep.subr.mxu0 0.0
        %1730 = vmatpush1.msra.mxu0 0.0
        %1731 = vmatprep.subr.mxu0 0.0
        %1732 = vmatpush1.msra.mxu0 0.0
        %1733 = vmatprep.mubr.f32.mxu0 0.0
        %1734 = vmatmul.mubr.f32.gmra.mrb[0].mxu0 %v1596
        %v1735 = vpop.f32.mrb[0].mxu0
        %v1736 = vadd.f32 %v1594, %v1735
        %v1737 = vpop.f32.mrb[0].mxu0
        %v1738 = vadd.f32 %v1594, %v1737
        %1739 = vdwg.mxu0
        %v1744 = vcombine.low %v1665, %v1667
        %v1745 = vcombine.low %v1736, %v1738
        %v1747 = vunpack.c.l.s4 1966171168
        %v1748 = vunpack.c.0.s8 %v1747
        %v1749 = vlaneseq
        %v1750 = vshrl.u32 %v1749, 7
        %v1751 = vsub.s32 %v1748, %v1750
        %v1752 = vrot.slane %v1744, %v1751
        %v1754 = vunpack.c.l.s4 1966171168
        %v1755 = vunpack.c.0.s8 %v1754
        %v1756 = vlaneseq
        %v1757 = vshrl.u32 %v1756, 7
        %v1758 = vsub.s32 %v1755, %v1757
        %v1759 = vrot.slane %v1745, %v1758
        %v1760 = vcombine.low %v1752, %v1759
        %v1762 = vunpack.c.l.s4 1966171168
        %v1763 = vunpack.c.0.s8 %v1762
        %v1764 = vlaneseq
        %v1765 = vshrl.u32 %v1764, 7
        %v1766 = vsub.s32 %v1763, %v1765
        %v1767 = vrot.slane %v1760, %v1766
        %v1769 = vlaneseq
        %vm1770 = vcmp.ge.s32.totalorder %v1769, 0
        %vm1771 = vcmp.lt.s32.totalorder %v1769, 512
        %vm1772 = vmand %vm1770, %vm1771
        %1773 = vst.msk [vmem:[%s328] sm:$0xf] %vm1772, %v1767
        %s1774 = sand.u32 %s227, 1
        %s1775 = scalar_lea.sflag [#allocation4], %s1774
        %s1776 = sand.u32 %s227, 1
        %s1777 = smul.addr %s1776, 4
        %s1778 = scalar_lea.vmem [#allocation3], %s1777
        // Predicated region
        $region57: #{tpu_custom_call.1} parent=55 // pred_check
          %p1779 = pneg %p237
        $region58: #{tpu_custom_call.1} parent=55 // pred_check_branch
          %1781 = sbr.rel (%p1779) target = $region60
        $region59: #{tpu_custom_call.1} parent=55 // pred_region
          %s1782 = smul.u32 4, %s25
          %s1784 = ssub.s32 64, 64
          %1785 = vsyncadd %s1775, %s1784
          %s1786 = smul.addr %s1782, 16
          %s1787 = scalar_lea.hbm %s9, %s1786
          %s1789 = sshll.u32 %s1778, 4
          %s1790 = int_to_ptr.vmem [resolvable:$true] %s1789
          %1792 = dma.vmem_to_hbm [thread:$0]  %s1790, 64, %s1787, %s1775
        $region60: #{tpu_custom_call.1} parent=55 // pred_fallthru
          _
      $region56: #{tpu_custom_call.1} parent=5 // pred_fallthru
        _
      %p1793 = scmp.le.s32.totalorder 2, %s20
      // Predicated region
      $region61: #{tpu_custom_call.1} parent=5 // pred_check
        %p1794 = pneg %p1793
      $region62: #{tpu_custom_call.1} parent=5 // pred_check_branch
        %1796 = sbr.rel (%p1794) target = $region64
      $region63: #{tpu_custom_call.1} parent=5 // pred_region
        %s1797 = ssub.s32 %s20, 2
        // Predicated region
        $region65: #{tpu_custom_call.1} parent=63 // pred_check
          %p1798 = pneg %p243
        $region66: #{tpu_custom_call.1} parent=63 // pred_check_branch
          %1800 = sbr.rel (%p1798) target = $region68
        $region67: #{tpu_custom_call.1} parent=63 // pred_region
          %s1801 = sand.u32 %s228, 1
          %s1802 = scalar_lea.sflag [#allocation4], %s1801
          %s1803 = sand.u32 %s228, 1
          %s1804 = smul.addr %s1803, 4
          %s1805 = scalar_lea.vmem [#allocation3], %s1804
          %1806 = dma.done %s1802, 64
        $region68: #{tpu_custom_call.1} parent=63 // pred_fallthru
          _
      $region64: #{tpu_custom_call.1} parent=5 // pred_fallthru
        _
    $region6: #{tpu_custom_call.1} parent=1 // loop_footer
      %s24 = sadd.s32 1, %s20
    $region7: #{tpu_custom_call.1} parent=1 // loop_footer_branch
      %19 = sbr.rel target = $region3
    $region8: #{tpu_custom_call.1} parent=1 // loop_exit
      _
    %1807 = vsyncpa [#allocation4], 1
    %s1808 = scalar_lea.sflag [#allocation4], 1
    %1809 = vsyncpa %s1808, 1

</llo_original>
